<compile_context>
chip_gen: v5e
topology: v5e:2x2
jax: 0.10.0
libtpu: 0.0.40
codegen_flags: <defaults>
</compile_context>

<pallas_src>
import functools

import jax
import jax.numpy as jnp
from jax.experimental import pallas as pl
from jax.experimental.pallas import tpu as pltpu

EPS = 1e-5
NUM_CLASSES = 10
CLS_PAD = 128          # lane-dense classifier output width (sliced back to 10)


# ---------------- in-kernel helpers ----------------
def _layernorm(x, gamma, beta):
    mu = jnp.mean(x, axis=-1, keepdims=True)
    var = jnp.mean((x - mu) ** 2, axis=-1, keepdims=True)
    return (x - mu) * jax.lax.rsqrt(var + EPS) * gamma + beta


def _gelu(x):
    # exact erf GELU (matches torch.nn.functional.gelu default)
    # TODO(synk): on v5e, jax.nn.gelu(approximate=True) moves this off the
    # VALU onto the otherwise-idle EUP (small numerics change vs torch).
    return 0.5 * x * (1.0 + jax.lax.erf(x * jnp.float32(0.7071067811865476)))


# ---------------- fused gMLP-stack kernel ----------------
def gmlp_stack_kernel(
    h0_ref,                                # (1, ROWS, D) f32 patch embedding (per batch tile)
    ln1_g_ref, ln1_b_ref,                  # (1, 1, D)   per-layer
    w1_ref, b1_ref,                        # (1, D, F) / (1, 1, F)
    wdu_ref, bdu_ref,                      # (1, F, F) / (1, 1, F)
    wdv_ref, bdv_ref,                      # (1, F, F) / (1, 1, F)
    ln2_g_ref, ln2_b_ref,                  # (1, 1, F)
    ws_ref, bs_ref,                        # (1, N, N) / (1, ROWS, 1)  (+1.0 folded into bs)
    w2_ref, b2_ref,                        # (1, F, D) / (1, 1, D)
    wc_ref, bc_ref,                        # (D, CLS_PAD) bf16 / (1, CLS_PAD) f32
    out_ref,                               # (1, B_TILE, CLS_PAD)
    h_ref,                                 # VMEM scratch (ROWS, D) f32 — carried activation
):
    layer = pl.program_id(1)
    n_layers = pl.num_programs(1)

    rows, d_model = h_ref.shape
    n_tok = ws_ref.shape[1]
    b_tile = rows // n_tok                 # batches per row tile (static)

    # ---- load the precomputed patch embedding on the first layer step ----
    @pl.when(layer == 0)
    def _init():
        h_ref[...] = h0_ref[0]

    # ---- one gMLP block on the resident activation ----
    x = h_ref[...]                                             # (ROWS, D) f32 residual
    xn = _layernorm(x, ln1_g_ref[0], ln1_b_ref[0])
    h1 = _gelu(
        jnp.dot(xn.astype(jnp.bfloat16), w1_ref[0],
                preferred_element_type=jnp.float32) + b1_ref[0]
    )                                                          # (ROWS, F) f32
    h1b = h1.astype(jnp.bfloat16)

    # SpatialGatingUnit — compute the v branch first so u is not live across
    # the token-mix matmul (lower VMEM / vreg pressure).
    v = jnp.dot(h1b, wdv_ref[0], preferred_element_type=jnp.float32) + bdv_ref[0]
    v = _layernorm(v, ln2_g_ref[0], ln2_b_ref[0])
    vb = v.astype(jnp.bfloat16)

    # token mixing: per-batch (N, N) weight applied to each batch's row slice
    ws = ws_ref[0]                                             # (N, N) bf16
    parts = [
        jnp.dot(ws, vb[b * n_tok:(b + 1) * n_tok, :],
                preferred_element_type=jnp.float32)
        for b in range(b_tile)
    ]
    mixed = parts[0] if b_tile == 1 else jnp.concatenate(parts, axis=0)
    mixed = mixed + bs_ref[0]                                  # bias has "+1.0" folded in

    u = jnp.dot(h1b, wdu_ref[0], preferred_element_type=jnp.float32) + bdu_ref[0]
    gated = (u * mixed).astype(jnp.bfloat16)

    h_new = x + jnp.dot(gated, w2_ref[0],
                        preferred_element_type=jnp.float32) + b2_ref[0]
    h_ref[...] = h_new

    # ---- mean-pool + classifier, only on the last layer step ----
    @pl.when(layer == n_layers - 1)
    def _classify():
        pooled = jnp.mean(h_new.reshape(b_tile, n_tok, d_model), axis=1)   # (B_TILE, D)
        logits = (
            jnp.dot(pooled.astype(jnp.bfloat16), wc_ref[...],
                    preferred_element_type=jnp.float32)
            + bc_ref[...]
        )
        out_ref[0] = logits


# ---------------- plain-JAX glue ----------------
def patchify_rearrange(x, p):
    # 'b c (h p1) (w p2) -> b (h w) (c p1 p2)'
    B, C, H, W = x.shape
    x = x.reshape(B, C, H // p, p, W // p, p)
    x = x.transpose(0, 2, 4, 1, 3, 5)  # b h w c p1 p2
    return x.reshape(B, (H // p) * (W // p), C * p * p)


def pick_batch_tile(batch, n_tokens, target_rows=512):
    # Largest divisor of `batch` whose row tile fits a reasonable MXU/M size,
    # while keeping >= 2 tiles so the "parallel" axis can use both v7x cores.
    best = 1
    for bt in range(1, batch + 1):
        if batch % bt:
            continue
        if batch > 1 and batch // bt < 2:
            continue
        if bt * n_tokens <= target_rows:
            best = bt
    return best


def _vmem_limit_bytes():
    # Generation-gated scoped-VMEM request: ~56 MiB on v7x (64 MiB physical),
    # up to 100 MiB on v5e/v6e (128 MiB physical).
    try:
        cap = pltpu.get_tpu_info().vmem_capacity_bytes
        return min(int(cap) * 7 // 8, 100 * 1024 * 1024)
    except Exception:
        return 48 * 1024 * 1024


def pack_params(params, batch, n_tokens):
    """One-time per-parameter-set layout prep (stack layers, cast, fold biases)."""
    d_model = params["wp"].shape[1]
    d_ffn = params["layers"][0]["w1"].shape[1]
    b_tile = pick_batch_tile(batch, n_tokens)

    def stack(k):
        return jnp.stack([lp[k] for lp in params["layers"]])

    wd, bd = stack("wd"), stack("bd")                          # (L, F, 2F) / (L, 1, 2F)
    packed = dict(
        wp=params["wp"], bp=params["bp"],                      # f32 (embed runs in XLA)
        ln1_g=stack("ln1_g"), ln1_b=stack("ln1_b"),            # (L, 1, D)
        w1=stack("w1").astype(jnp.bfloat16), b1=stack("b1"),   # (L, D, F) / (L, 1, F)
        wdu=wd[:, :, :d_ffn].astype(jnp.bfloat16),
        wdv=wd[:, :, d_ffn:].astype(jnp.bfloat16),
        bdu=bd[:, :, :d_ffn], bdv=bd[:, :, d_ffn:],
        ln2_g=stack("ln2_g"), ln2_b=stack("ln2_b"),            # (L, 1, F)
        ws=stack("ws").astype(jnp.bfloat16),                   # (L, N, N)
        bs=jnp.tile(stack("bs") + 1.0, (1, b_tile, 1)),        # (L, ROWS, 1), +1 folded
        w2=stack("w2").astype(jnp.bfloat16), b2=stack("b2"),   # (L, F, D) / (L, 1, D)
        wc=jnp.zeros((d_model, CLS_PAD), jnp.float32)
            .at[:, :NUM_CLASSES].set(params["wc"]).astype(jnp.bfloat16),
        bc=jnp.zeros((1, CLS_PAD), jnp.float32)
            .at[:, :NUM_CLASSES].set(params["bc"]),
    )
    return packed


def model_forward(packed, x, patch_size):
    B = x.shape[0]
    tokens3 = patchify_rearrange(x, patch_size)                # (B, N, Cin)
    _, N, Cin = tokens3.shape
    D = packed["wp"].shape[1]
    F = packed["w1"].shape[2]
    L = packed["w1"].shape[0]
    ROWS = packed["bs"].shape[1]                               # B_TILE * N
    B_TILE = ROWS // N
    num_tiles = B // B_TILE

    # Patch embedding in XLA (tiny dense); per-batch-tile layout for the kernel.
    h0 = tokens3.reshape(B * N, Cin) @ packed["wp"] + packed["bp"]   # (B*N, D) f32
    h0 = h0.reshape(num_tiles, ROWS, D)

    def per_layer(shape):
        return pl.BlockSpec((1,) + shape, lambda bt, l: (l, 0, 0))

    def per_tile(shape):
        return pl.BlockSpec((1,) + shape, lambda bt, l: (bt, 0, 0))

    def const2d(shape):
        return pl.BlockSpec(shape, lambda bt, l: (0, 0))

    logits_pad = pl.pallas_call(
        gmlp_stack_kernel,
        out_shape=jax.ShapeDtypeStruct((num_tiles, B_TILE, CLS_PAD), jnp.float32),
        grid=(num_tiles, L),
        in_specs=[
            per_tile((ROWS, D)),                               # h0 (patch embedding)
            per_layer((1, D)), per_layer((1, D)),              # ln1 g/b
            per_layer((D, F)), per_layer((1, F)),              # w1, b1
            per_layer((F, F)), per_layer((1, F)),              # wdu, bdu
            per_layer((F, F)), per_layer((1, F)),              # wdv, bdv
            per_layer((1, F)), per_layer((1, F)),              # ln2 g/b
            per_layer((N, N)), per_layer((ROWS, 1)),           # ws, bs(+1)
            per_layer((F, D)), per_layer((1, D)),              # w2, b2
            const2d((D, CLS_PAD)), const2d((1, CLS_PAD)),      # wc, bc
        ],
        out_specs=pl.BlockSpec((1, B_TILE, CLS_PAD), lambda bt, l: (bt, 0, 0)),
        scratch_shapes=[pltpu.VMEM((ROWS, D), jnp.float32)],
        compiler_params=pltpu.CompilerParams(
            dimension_semantics=("parallel", "arbitrary"),     # layer axis carries state
            vmem_limit_bytes=_vmem_limit_bytes(),
        ),
    )(
        h0,
        packed["ln1_g"], packed["ln1_b"],
        packed["w1"], packed["b1"],
        packed["wdu"], packed["bdu"],
        packed["wdv"], packed["bdv"],
        packed["ln2_g"], packed["ln2_b"],
        packed["ws"], packed["bs"],
        packed["w2"], packed["b2"],
        packed["wc"], packed["bc"],
    )
    return logits_pad.reshape(B, CLS_PAD)[:, :NUM_CLASSES]


# ---------------- parameter init ----------------
def init_params(key, image_size, patch_size, n_layers, d_model, d_ffn):
    n_tokens = (image_size // patch_size) ** 2
    cin = 3 * patch_size * patch_size

    def dense(k, fan_in, fan_out):
        kw, kb = jax.random.split(k)
        w = jax.random.normal(kw, (fan_in, fan_out), jnp.float32) * (
            1.0 / jnp.sqrt(jnp.float32(fan_in))
        )
        b = jax.random.normal(kb, (1, fan_out), jnp.float32) * 0.01
        return w, b

    keys = jax.random.split(key, 2 + n_layers)
    wp, bp = dense(keys[0], cin, d_model)
    wc, bc = dense(keys[1], d_model, NUM_CLASSES)

    layers = []
    for i in range(n_layers):
        lk = jax.random.split(keys[2 + i], 4)
        w1, b1 = dense(lk[0], d_model, d_ffn)
        wd, bd = dense(lk[1], d_ffn, 2 * d_ffn)
        ws, bs = dense(lk[2], n_tokens, n_tokens)
        w2, b2 = dense(lk[3], d_ffn, d_model)
        layers.append(dict(
            ln1_g=jnp.ones((1, d_model), jnp.float32),
            ln1_b=jnp.zeros((1, d_model), jnp.float32),
            w1=w1, b1=b1,
            wd=wd, bd=bd,
            ln2_g=jnp.ones((1, d_ffn), jnp.float32),
            ln2_b=jnp.zeros((1, d_ffn), jnp.float32),
            ws=ws, bs=bs.reshape(n_tokens, 1),
            w2=w2, b2=b2,
        ))
    return dict(wp=wp, bp=bp, wc=wc, bc=bc, layers=layers)


# ---------------- pure-JAX f32 reference (for verification) ----------------
def model_reference(params, x, patch_size):
    tokens = patchify_rearrange(x, patch_size)
    h = tokens @ params["wp"] + params["bp"]
    for p in params["layers"]:
        shortcut = h
        y = _layernorm(h, p["ln1_g"], p["ln1_b"])
        y = _gelu(y @ p["w1"] + p["b1"])
        d = y @ p["wd"] + p["bd"]
        F_ = p["wd"].shape[1] // 2
        u, v = d[..., :F_], d[..., F_:]
        v = _layernorm(v, p["ln2_g"], p["ln2_b"])
        v = jnp.einsum("nm,bmf->bnf", p["ws"], v) + p["bs"][None] + 1.0
        h = shortcut + (u * v) @ p["w2"] + p["b2"]
    pooled = jnp.mean(h, axis=1)
    return pooled @ params["wc"] + params["bc"]


if __name__ == "__main__":
    image_size = 16
    patch_size = 4       # -> 16 tokens
    n_layers = 3
    d_model = 128        # lane-aligned feature dims (production defaults 256/1024
    d_ffn = 256          # are also multiples of 128)
    batch = 2
    n_tokens = (image_size // patch_size) ** 2

    key = jax.random.PRNGKey(0)
    x = jax.random.normal(key, (batch, 3, image_size, image_size), jnp.float32)
    params = init_params(
        jax.random.PRNGKey(1), image_size, patch_size, n_layers, d_model, d_ffn
    )
    packed = pack_params(params, batch, n_tokens)   # one-time layout prep

    fwd = jax.jit(functools.partial(model_forward, patch_size=patch_size))
    out = jax.block_until_ready(fwd(packed, x))
    assert out.shape == (batch, NUM_CLASSES), out.shape

    ref = jax.block_until_ready(model_reference(params, x, patch_size))
    assert jnp.all(jnp.isfinite(out))
    # bf16 matmul inputs (f32 accumulation) vs. pure-f32 reference -> 2e-2 tol
    assert jnp.allclose(out, ref, rtol=2e-2, atol=2e-2), (
        float(jnp.max(jnp.abs(out - ref)))
    )

    print("KERNEL_OK")
</pallas_src>

<mosaic_0001>
module attributes {stable_mosaic.version = 11 : i64} {
  func.func @gmlp_stack_kernel(%arg0: i32, %arg1: i32, %arg2: memref<1x16x128xf32, #tpu.memory_space<vmem>>, %arg3: memref<1x1x128xf32, #tpu.memory_space<vmem>>, %arg4: memref<1x1x128xf32, #tpu.memory_space<vmem>>, %arg5: memref<1x128x256xbf16, #tpu.memory_space<vmem>>, %arg6: memref<1x1x256xf32, #tpu.memory_space<vmem>>, %arg7: memref<1x256x256xbf16, #tpu.memory_space<vmem>>, %arg8: memref<1x1x256xf32, #tpu.memory_space<vmem>>, %arg9: memref<1x256x256xbf16, #tpu.memory_space<vmem>>, %arg10: memref<1x1x256xf32, #tpu.memory_space<vmem>>, %arg11: memref<1x1x256xf32, #tpu.memory_space<vmem>>, %arg12: memref<1x1x256xf32, #tpu.memory_space<vmem>>, %arg13: memref<1x16x16xbf16, #tpu.memory_space<vmem>>, %arg14: memref<1x16x1xf32, #tpu.memory_space<vmem>>, %arg15: memref<1x256x128xbf16, #tpu.memory_space<vmem>>, %arg16: memref<1x1x128xf32, #tpu.memory_space<vmem>>, %arg17: memref<128x128xbf16, #tpu.memory_space<vmem>>, %arg18: memref<1x128xf32, #tpu.memory_space<vmem>>, %arg19: memref<1x1x128xf32, #tpu.memory_space<vmem>>, %arg20: memref<16x128xf32, #tpu.memory_space<vmem>>) attributes {dimension_semantics = [#tpu.dimension_semantics<parallel>, #tpu.dimension_semantics<arbitrary>], iteration_bounds = array<i64: 2, 3>, scalar_prefetch = 0 : i64, scratch_operands = 1 : i64, tpu.core_type = #tpu.core_type<tc>, window_params = [{transform_indices = @transform_0, window_bounds = array<i64: 1, 16, 128>}, {transform_indices = @transform_1, window_bounds = array<i64: 1, 1, 128>}, {transform_indices = @transform_2, window_bounds = array<i64: 1, 1, 128>}, {transform_indices = @transform_3, window_bounds = array<i64: 1, 128, 256>}, {transform_indices = @transform_4, window_bounds = array<i64: 1, 1, 256>}, {transform_indices = @transform_5, window_bounds = array<i64: 1, 256, 256>}, {transform_indices = @transform_6, window_bounds = array<i64: 1, 1, 256>}, {transform_indices = @transform_7, window_bounds = array<i64: 1, 256, 256>}, {transform_indices = @transform_8, window_bounds = array<i64: 1, 1, 256>}, {transform_indices = @transform_9, window_bounds = array<i64: 1, 1, 256>}, {transform_indices = @transform_10, window_bounds = array<i64: 1, 1, 256>}, {transform_indices = @transform_11, window_bounds = array<i64: 1, 16, 16>}, {transform_indices = @transform_12, window_bounds = array<i64: 1, 16, 1>}, {transform_indices = @transform_13, window_bounds = array<i64: 1, 256, 128>}, {transform_indices = @transform_14, window_bounds = array<i64: 1, 1, 128>}, {pipeline_mode = #tpu.pipeline_mode<synchronous>, transform_indices = @transform_15, window_bounds = array<i64: 128, 128>}, {pipeline_mode = #tpu.pipeline_mode<synchronous>, transform_indices = @transform_16, window_bounds = array<i64: 1, 128>}, {transform_indices = @transform_17, window_bounds = array<i64: 1, 1, 128>}]} {
    %c0_i32 = arith.constant 0 : i32
    %0 = arith.cmpi eq, %arg1, %c0_i32 : i32
    %1 = arith.extui %0 : i1 to i32
    %c0_i32_0 = arith.constant 0 : i32
    %2 = arith.cmpi ne, %1, %c0_i32_0 : i32
    scf.if %2 {
      %c0_64 = arith.constant 0 : index
      %c0_65 = arith.constant 0 : index
      %c0_66 = arith.constant 0 : index
      %109 = vector.load %arg2[%c0_64, %c0_65, %c0_66] : memref<1x16x128xf32, #tpu.memory_space<vmem>>, vector<1x16x128xf32>
      %110 = vector.shape_cast %109 : vector<1x16x128xf32> to vector<16x128xf32>
      %c0_67 = arith.constant 0 : index
      %c0_68 = arith.constant 0 : index
      %111 = vector.load %arg20[%c0_67, %c0_68] : memref<16x128xf32, #tpu.memory_space<vmem>>, vector<16x128xf32>
      tpu.vector_store %arg20[%c0_67, %c0_68], %110 {strides = array<i32>} : memref<16x128xf32, #tpu.memory_space<vmem>>, vector<16x128xf32>,
    } else {
    }
    %c0 = arith.constant 0 : index
    %c0_1 = arith.constant 0 : index
    %3 = vector.load %arg20[%c0, %c0_1] : memref<16x128xf32, #tpu.memory_space<vmem>>, vector<16x128xf32>
    %c0_2 = arith.constant 0 : index
    %c0_3 = arith.constant 0 : index
    %c0_4 = arith.constant 0 : index
    %4 = vector.load %arg3[%c0_2, %c0_3, %c0_4] : memref<1x1x128xf32, #tpu.memory_space<vmem>>, vector<1x1x128xf32>
    %5 = vector.shape_cast %4 : vector<1x1x128xf32> to vector<1x128xf32>
    %c0_5 = arith.constant 0 : index
    %c0_6 = arith.constant 0 : index
    %c0_7 = arith.constant 0 : index
    %6 = vector.load %arg4[%c0_5, %c0_6, %c0_7] : memref<1x1x128xf32, #tpu.memory_space<vmem>>, vector<1x1x128xf32>
    %7 = vector.shape_cast %6 : vector<1x1x128xf32> to vector<1x128xf32>
    %cst = arith.constant dense<0.000000e+00> : vector<16xf32>
    %8 = vector.multi_reduction <add>, %3, %cst [1] : vector<16x128xf32> to vector<16xf32>
    %9 = vector.shape_cast %8 : vector<16xf32> to vector<16x1xf32>
    %cst_8 = arith.constant 1.280000e+02 : f32
    %10 = vector.broadcast %cst_8 : f32 to vector<16x1xf32>
    %11 = arith.divf %9, %10 : vector<16x1xf32>
    %12 = vector.broadcast %11 : vector<16x1xf32> to vector<16x128xf32>
    %13 = arith.subf %3, %12 : vector<16x128xf32>
    %14 = arith.mulf %13, %13 : vector<16x128xf32>
    %cst_9 = arith.constant dense<0.000000e+00> : vector<16xf32>
    %15 = vector.multi_reduction <add>, %14, %cst_9 [1] : vector<16x128xf32> to vector<16xf32>
    %16 = vector.shape_cast %15 : vector<16xf32> to vector<16x1xf32>
    %cst_10 = arith.constant 1.280000e+02 : f32
    %17 = vector.broadcast %cst_10 : f32 to vector<16x1xf32>
    %18 = arith.divf %16, %17 : vector<16x1xf32>
    %19 = vector.broadcast %11 : vector<16x1xf32> to vector<16x128xf32>
    %20 = arith.subf %3, %19 : vector<16x128xf32>
    %cst_11 = arith.constant 9.99999974E-6 : f32
    %21 = vector.broadcast %cst_11 : f32 to vector<16x1xf32>
    %22 = arith.addf %18, %21 : vector<16x1xf32>
    %23 = math.rsqrt %22 : vector<16x1xf32>
    %24 = vector.broadcast %23 : vector<16x1xf32> to vector<16x128xf32>
    %25 = arith.mulf %20, %24 : vector<16x128xf32>
    %26 = vector.broadcast %5 : vector<1x128xf32> to vector<16x128xf32>
    %27 = arith.mulf %25, %26 : vector<16x128xf32>
    %28 = vector.broadcast %7 : vector<1x128xf32> to vector<16x128xf32>
    %29 = arith.addf %27, %28 : vector<16x128xf32>
    %30 = arith.truncf %29 : vector<16x128xf32> to vector<16x128xbf16>
    %c0_12 = arith.constant 0 : index
    %c0_13 = arith.constant 0 : index
    %c0_14 = arith.constant 0 : index
    %31 = vector.load %arg5[%c0_12, %c0_13, %c0_14] : memref<1x128x256xbf16, #tpu.memory_space<vmem>>, vector<1x128x256xbf16>
    %32 = vector.shape_cast %31 : vector<1x128x256xbf16> to vector<128x256xbf16>
    %cst_15 = arith.constant dense<0.000000e+00> : vector<16x256xf32>
    %33 = tpu.matmul %30, %32, %cst_15 {dimension_numbers = #tpu.dot_dimension_numbers<[1], [0], [0], [1], [0, 0, 1, 1], [], []>} : vector<16x128xbf16>, vector<128x256xbf16>, vector<16x256xf32> -> vector<16x256xf32>
    %c0_16 = arith.constant 0 : index
    %c0_17 = arith.constant 0 : index
    %c0_18 = arith.constant 0 : index
    %34 = vector.load %arg6[%c0_16, %c0_17, %c0_18] : memref<1x1x256xf32, #tpu.memory_space<vmem>>, vector<1x1x256xf32>
    %35 = vector.shape_cast %34 : vector<1x1x256xf32> to vector<1x256xf32>
    %36 = vector.broadcast %35 : vector<1x256xf32> to vector<16x256xf32>
    %37 = arith.addf %33, %36 : vector<16x256xf32>
    %cst_19 = arith.constant 5.000000e-01 : f32
    %38 = vector.broadcast %cst_19 : f32 to vector<16x256xf32>
    %39 = arith.mulf %38, %37 : vector<16x256xf32>
    %cst_20 = arith.constant 0.707106769 : f32
    %40 = vector.broadcast %cst_20 : f32 to vector<16x256xf32>
    %41 = arith.mulf %37, %40 : vector<16x256xf32>
    %42 = math.erf %41 : vector<16x256xf32>
    %cst_21 = arith.constant 1.000000e+00 : f32
    %43 = vector.broadcast %cst_21 : f32 to vector<16x256xf32>
    %44 = arith.addf %43, %42 : vector<16x256xf32>
    %45 = arith.mulf %39, %44 : vector<16x256xf32>
    %46 = arith.truncf %45 : vector<16x256xf32> to vector<16x256xbf16>
    %c0_22 = arith.constant 0 : index
    %c0_23 = arith.constant 0 : index
    %c0_24 = arith.constant 0 : index
    %47 = vector.load %arg9[%c0_22, %c0_23, %c0_24] : memref<1x256x256xbf16, #tpu.memory_space<vmem>>, vector<1x256x256xbf16>
    %48 = vector.shape_cast %47 : vector<1x256x256xbf16> to vector<256x256xbf16>
    %cst_25 = arith.constant dense<0.000000e+00> : vector<16x256xf32>
    %49 = tpu.matmul %46, %48, %cst_25 {dimension_numbers = #tpu.dot_dimension_numbers<[1], [0], [0], [1], [0, 0, 1, 1], [], []>} : vector<16x256xbf16>, vector<256x256xbf16>, vector<16x256xf32> -> vector<16x256xf32>
    %c0_26 = arith.constant 0 : index
    %c0_27 = arith.constant 0 : index
    %c0_28 = arith.constant 0 : index
    %50 = vector.load %arg10[%c0_26, %c0_27, %c0_28] : memref<1x1x256xf32, #tpu.memory_space<vmem>>, vector<1x1x256xf32>
    %51 = vector.shape_cast %50 : vector<1x1x256xf32> to vector<1x256xf32>
    %52 = vector.broadcast %51 : vector<1x256xf32> to vector<16x256xf32>
    %53 = arith.addf %49, %52 : vector<16x256xf32>
    %c0_29 = arith.constant 0 : index
    %c0_30 = arith.constant 0 : index
    %c0_31 = arith.constant 0 : index
    %54 = vector.load %arg11[%c0_29, %c0_30, %c0_31] : memref<1x1x256xf32, #tpu.memory_space<vmem>>, vector<1x1x256xf32>
    %55 = vector.shape_cast %54 : vector<1x1x256xf32> to vector<1x256xf32>
    %c0_32 = arith.constant 0 : index
    %c0_33 = arith.constant 0 : index
    %c0_34 = arith.constant 0 : index
    %56 = vector.load %arg12[%c0_32, %c0_33, %c0_34] : memref<1x1x256xf32, #tpu.memory_space<vmem>>, vector<1x1x256xf32>
    %57 = vector.shape_cast %56 : vector<1x1x256xf32> to vector<1x256xf32>
    %cst_35 = arith.constant dense<0.000000e+00> : vector<16xf32>
    %58 = vector.multi_reduction <add>, %53, %cst_35 [1] : vector<16x256xf32> to vector<16xf32>
    %59 = vector.shape_cast %58 : vector<16xf32> to vector<16x1xf32>
    %cst_36 = arith.constant 2.560000e+02 : f32
    %60 = vector.broadcast %cst_36 : f32 to vector<16x1xf32>
    %61 = arith.divf %59, %60 : vector<16x1xf32>
    %62 = vector.broadcast %61 : vector<16x1xf32> to vector<16x256xf32>
    %63 = arith.subf %53, %62 : vector<16x256xf32>
    %64 = arith.mulf %63, %63 : vector<16x256xf32>
    %cst_37 = arith.constant dense<0.000000e+00> : vector<16xf32>
    %65 = vector.multi_reduction <add>, %64, %cst_37 [1] : vector<16x256xf32> to vector<16xf32>
    %66 = vector.shape_cast %65 : vector<16xf32> to vector<16x1xf32>
    %cst_38 = arith.constant 2.560000e+02 : f32
    %67 = vector.broadcast %cst_38 : f32 to vector<16x1xf32>
    %68 = arith.divf %66, %67 : vector<16x1xf32>
    %69 = vector.broadcast %61 : vector<16x1xf32> to vector<16x256xf32>
    %70 = arith.subf %53, %69 : vector<16x256xf32>
    %cst_39 = arith.constant 9.99999974E-6 : f32
    %71 = vector.broadcast %cst_39 : f32 to vector<16x1xf32>
    %72 = arith.addf %68, %71 : vector<16x1xf32>
    %73 = math.rsqrt %72 : vector<16x1xf32>
    %74 = vector.broadcast %73 : vector<16x1xf32> to vector<16x256xf32>
    %75 = arith.mulf %70, %74 : vector<16x256xf32>
    %76 = vector.broadcast %55 : vector<1x256xf32> to vector<16x256xf32>
    %77 = arith.mulf %75, %76 : vector<16x256xf32>
    %78 = vector.broadcast %57 : vector<1x256xf32> to vector<16x256xf32>
    %79 = arith.addf %77, %78 : vector<16x256xf32>
    %80 = arith.truncf %79 : vector<16x256xf32> to vector<16x256xbf16>
    %c0_40 = arith.constant 0 : index
    %c0_41 = arith.constant 0 : index
    %c0_42 = arith.constant 0 : index
    %81 = vector.load %arg13[%c0_40, %c0_41, %c0_42] : memref<1x16x16xbf16, #tpu.memory_space<vmem>>, vector<1x16x16xbf16>
    %82 = vector.shape_cast %81 : vector<1x16x16xbf16> to vector<16x16xbf16>
    %cst_43 = arith.constant dense<0.000000e+00> : vector<16x256xf32>
    %83 = tpu.matmul %82, %80, %cst_43 {dimension_numbers = #tpu.dot_dimension_numbers<[1], [0], [0], [1], [0, 0, 1, 1], [], []>} : vector<16x16xbf16>, vector<16x256xbf16>, vector<16x256xf32> -> vector<16x256xf32>
    %c0_44 = arith.constant 0 : index
    %c0_45 = arith.constant 0 : index
    %c0_46 = arith.constant 0 : index
    %84 = vector.load %arg14[%c0_44, %c0_45, %c0_46] : memref<1x16x1xf32, #tpu.memory_space<vmem>>, vector<1x16x1xf32>
    %85 = vector.shape_cast %84 : vector<1x16x1xf32> to vector<16x1xf32>
    %86 = vector.broadcast %85 : vector<16x1xf32> to vector<16x256xf32>
    %87 = arith.addf %83, %86 : vector<16x256xf32>
    %c0_47 = arith.constant 0 : index
    %c0_48 = arith.constant 0 : index
    %c0_49 = arith.constant 0 : index
    %88 = vector.load %arg7[%c0_47, %c0_48, %c0_49] : memref<1x256x256xbf16, #tpu.memory_space<vmem>>, vector<1x256x256xbf16>
    %89 = vector.shape_cast %88 : vector<1x256x256xbf16> to vector<256x256xbf16>
    %cst_50 = arith.constant dense<0.000000e+00> : vector<16x256xf32>
    %90 = tpu.matmul %46, %89, %cst_50 {dimension_numbers = #tpu.dot_dimension_numbers<[1], [0], [0], [1], [0, 0, 1, 1], [], []>} : vector<16x256xbf16>, vector<256x256xbf16>, vector<16x256xf32> -> vector<16x256xf32>
    %c0_51 = arith.constant 0 : index
    %c0_52 = arith.constant 0 : index
    %c0_53 = arith.constant 0 : index
    %91 = vector.load %arg8[%c0_51, %c0_52, %c0_53] : memref<1x1x256xf32, #tpu.memory_space<vmem>>, vector<1x1x256xf32>
    %92 = vector.shape_cast %91 : vector<1x1x256xf32> to vector<1x256xf32>
    %93 = vector.broadcast %92 : vector<1x256xf32> to vector<16x256xf32>
    %94 = arith.addf %90, %93 : vector<16x256xf32>
    %95 = arith.mulf %94, %87 : vector<16x256xf32>
    %96 = arith.truncf %95 : vector<16x256xf32> to vector<16x256xbf16>
    %c0_54 = arith.constant 0 : index
    %c0_55 = arith.constant 0 : index
    %c0_56 = arith.constant 0 : index
    %97 = vector.load %arg15[%c0_54, %c0_55, %c0_56] : memref<1x256x128xbf16, #tpu.memory_space<vmem>>, vector<1x256x128xbf16>
    %98 = vector.shape_cast %97 : vector<1x256x128xbf16> to vector<256x128xbf16>
    %cst_57 = arith.constant dense<0.000000e+00> : vector<16x128xf32>
    %99 = tpu.matmul %96, %98, %cst_57 {dimension_numbers = #tpu.dot_dimension_numbers<[1], [0], [0], [1], [0, 0, 1, 1], [], []>} : vector<16x256xbf16>, vector<256x128xbf16>, vector<16x128xf32> -> vector<16x128xf32>
    %100 = arith.addf %3, %99 : vector<16x128xf32>
    %c0_58 = arith.constant 0 : index
    %c0_59 = arith.constant 0 : index
    %c0_60 = arith.constant 0 : index
    %101 = vector.load %arg16[%c0_58, %c0_59, %c0_60] : memref<1x1x128xf32, #tpu.memory_space<vmem>>, vector<1x1x128xf32>
    %102 = vector.shape_cast %101 : vector<1x1x128xf32> to vector<1x128xf32>
    %103 = vector.broadcast %102 : vector<1x128xf32> to vector<16x128xf32>
    %104 = arith.addf %100, %103 : vector<16x128xf32>
    %c0_61 = arith.constant 0 : index
    %c0_62 = arith.constant 0 : index
    %105 = vector.load %arg20[%c0_61, %c0_62] : memref<16x128xf32, #tpu.memory_space<vmem>>, vector<16x128xf32>
    tpu.vector_store %arg20[%c0_61, %c0_62], %104 {strides = array<i32>} : memref<16x128xf32, #tpu.memory_space<vmem>>, vector<16x128xf32>,
    %c2_i32 = arith.constant 2 : i32
    %106 = arith.cmpi eq, %arg1, %c2_i32 : i32
    %107 = arith.extui %106 : i1 to i32
    %c0_i32_63 = arith.constant 0 : i32
    %108 = arith.cmpi ne, %107, %c0_i32_63 : i32
    scf.if %108 {
      %109 = vector.shape_cast %104 : vector<16x128xf32> to vector<1x16x128xf32>
      %cst_64 = arith.constant dense<0.000000e+00> : vector<1x128xf32>
      %110 = vector.multi_reduction <add>, %109, %cst_64 [1] : vector<1x16x128xf32> to vector<1x128xf32>
      %cst_65 = arith.constant 1.600000e+01 : f32
      %111 = vector.broadcast %cst_65 : f32 to vector<1x128xf32>
      %112 = arith.divf %110, %111 : vector<1x128xf32>
      %113 = arith.truncf %112 : vector<1x128xf32> to vector<1x128xbf16>
      %c0_66 = arith.constant 0 : index
      %c0_67 = arith.constant 0 : index
      %114 = vector.load %arg17[%c0_66, %c0_67] : memref<128x128xbf16, #tpu.memory_space<vmem>>, vector<128x128xbf16>
      %cst_68 = arith.constant dense<0.000000e+00> : vector<1x128xf32>
      %115 = tpu.matmul %113, %114, %cst_68 {dimension_numbers = #tpu.dot_dimension_numbers<[1], [0], [0], [1], [0, 0, 1, 1], [], []>} : vector<1x128xbf16>, vector<128x128xbf16>, vector<1x128xf32> -> vector<1x128xf32>
      %c0_69 = arith.constant 0 : index
      %c0_70 = arith.constant 0 : index
      %116 = vector.load %arg18[%c0_69, %c0_70] : memref<1x128xf32, #tpu.memory_space<vmem>>, vector<1x128xf32>
      %117 = arith.addf %115, %116 : vector<1x128xf32>
      %c0_71 = arith.constant 0 : index
      %c0_72 = arith.constant 0 : index
      %c0_73 = arith.constant 0 : index
      %118 = vector.load %arg19[%c0_71, %c0_72, %c0_73] : memref<1x1x128xf32, #tpu.memory_space<vmem>>, vector<1x1x128xf32>
      %119 = vector.shape_cast %118 : vector<1x1x128xf32> to vector<1x128xf32>
      %120 = vector.shape_cast %117 : vector<1x128xf32> to vector<1x1x128xf32>
      tpu.vector_store %arg19[%c0_71, %c0_72, %c0_73], %120 {strides = array<i32>} : memref<1x1x128xf32, #tpu.memory_space<vmem>>, vector<1x1x128xf32>,
    } else {
    }
    return
  }
  func.func @transform_0(%arg0: i32, %arg1: i32) -> (i32, i32, i32) {
    %c0_i32 = arith.constant 0 : i32
    %c0_i32_0 = arith.constant 0 : i32
    %c0_i32_1 = arith.constant 0 : i32
    return %arg0, %c0_i32, %c0_i32_0 : i32, i32, i32
  }
  func.func @transform_1(%arg0: i32, %arg1: i32) -> (i32, i32, i32) {
    %c0_i32 = arith.constant 0 : i32
    %c0_i32_0 = arith.constant 0 : i32
    %c0_i32_1 = arith.constant 0 : i32
    return %arg1, %c0_i32, %c0_i32_0 : i32, i32, i32
  }
  func.func @transform_2(%arg0: i32, %arg1: i32) -> (i32, i32, i32) {
    %c0_i32 = arith.constant 0 : i32
    %c0_i32_0 = arith.constant 0 : i32
    %c0_i32_1 = arith.constant 0 : i32
    return %arg1, %c0_i32, %c0_i32_0 : i32, i32, i32
  }
  func.func @transform_3(%arg0: i32, %arg1: i32) -> (i32, i32, i32) {
    %c0_i32 = arith.constant 0 : i32
    %c0_i32_0 = arith.constant 0 : i32
    %c0_i32_1 = arith.constant 0 : i32
    return %arg1, %c0_i32, %c0_i32_0 : i32, i32, i32
  }
  func.func @transform_4(%arg0: i32, %arg1: i32) -> (i32, i32, i32) {
    %c0_i32 = arith.constant 0 : i32
    %c0_i32_0 = arith.constant 0 : i32
    %c0_i32_1 = arith.constant 0 : i32
    return %arg1, %c0_i32, %c0_i32_0 : i32, i32, i32
  }
  func.func @transform_5(%arg0: i32, %arg1: i32) -> (i32, i32, i32) {
    %c0_i32 = arith.constant 0 : i32
    %c0_i32_0 = arith.constant 0 : i32
    %c0_i32_1 = arith.constant 0 : i32
    return %arg1, %c0_i32, %c0_i32_0 : i32, i32, i32
  }
  func.func @transform_6(%arg0: i32, %arg1: i32) -> (i32, i32, i32) {
    %c0_i32 = arith.constant 0 : i32
    %c0_i32_0 = arith.constant 0 : i32
    %c0_i32_1 = arith.constant 0 : i32
    return %arg1, %c0_i32, %c0_i32_0 : i32, i32, i32
  }
  func.func @transform_7(%arg0: i32, %arg1: i32) -> (i32, i32, i32) {
    %c0_i32 = arith.constant 0 : i32
    %c0_i32_0 = arith.constant 0 : i32
    %c0_i32_1 = arith.constant 0 : i32
    return %arg1, %c0_i32, %c0_i32_0 : i32, i32, i32
  }
  func.func @transform_8(%arg0: i32, %arg1: i32) -> (i32, i32, i32) {
    %c0_i32 = arith.constant 0 : i32
    %c0_i32_0 = arith.constant 0 : i32
    %c0_i32_1 = arith.constant 0 : i32
    return %arg1, %c0_i32, %c0_i32_0 : i32, i32, i32
  }
  func.func @transform_9(%arg0: i32, %arg1: i32) -> (i32, i32, i32) {
    %c0_i32 = arith.constant 0 : i32
    %c0_i32_0 = arith.constant 0 : i32
    %c0_i32_1 = arith.constant 0 : i32
    return %arg1, %c0_i32, %c0_i32_0 : i32, i32, i32
  }
  func.func @transform_10(%arg0: i32, %arg1: i32) -> (i32, i32, i32) {
    %c0_i32 = arith.constant 0 : i32
    %c0_i32_0 = arith.constant 0 : i32
    %c0_i32_1 = arith.constant 0 : i32
    return %arg1, %c0_i32, %c0_i32_0 : i32, i32, i32
  }
  func.func @transform_11(%arg0: i32, %arg1: i32) -> (i32, i32, i32) {
    %c0_i32 = arith.constant 0 : i32
    %c0_i32_0 = arith.constant 0 : i32
    %c0_i32_1 = arith.constant 0 : i32
    return %arg1, %c0_i32, %c0_i32_0 : i32, i32, i32
  }
  func.func @transform_12(%arg0: i32, %arg1: i32) -> (i32, i32, i32) {
    %c0_i32 = arith.constant 0 : i32
    %c0_i32_0 = arith.constant 0 : i32
    %c0_i32_1 = arith.constant 0 : i32
    return %arg1, %c0_i32, %c0_i32_0 : i32, i32, i32
  }
  func.func @transform_13(%arg0: i32, %arg1: i32) -> (i32, i32, i32) {
    %c0_i32 = arith.constant 0 : i32
    %c0_i32_0 = arith.constant 0 : i32
    %c0_i32_1 = arith.constant 0 : i32
    return %arg1, %c0_i32, %c0_i32_0 : i32, i32, i32
  }
  func.func @transform_14(%arg0: i32, %arg1: i32) -> (i32, i32, i32) {
    %c0_i32 = arith.constant 0 : i32
    %c0_i32_0 = arith.constant 0 : i32
    %c0_i32_1 = arith.constant 0 : i32
    return %arg1, %c0_i32, %c0_i32_0 : i32, i32, i32
  }
  func.func @transform_15(%arg0: i32, %arg1: i32) -> (i32, i32) {
    %c0_i32 = arith.constant 0 : i32
    %c0_i32_0 = arith.constant 0 : i32
    %c0_i32_1 = arith.constant 0 : i32
    return %c0_i32, %c0_i32_0 : i32, i32
  }
  func.func @transform_16(%arg0: i32, %arg1: i32) -> (i32, i32) {
    %c0_i32 = arith.constant 0 : i32
    %c0_i32_0 = arith.constant 0 : i32
    %c0_i32_1 = arith.constant 0 : i32
    return %c0_i32, %c0_i32_0 : i32, i32
  }
  func.func @transform_17(%arg0: i32, %arg1: i32) -> (i32, i32, i32) {
    %c0_i32 = arith.constant 0 : i32
    %c0_i32_0 = arith.constant 0 : i32
    %c0_i32_1 = arith.constant 0 : i32
    return %arg0, %c0_i32, %c0_i32_0 : i32, i32, i32
  }
}

</mosaic_0001>

<llo_original>
// kernel: model_forward.1
$region0: #{model_forward.1}
  #allocation0 [shape = 'u32[]', space=smem, size = 0x4, offset = 0x4, fixed_abs, tag = 'smem constant byte address 0x4 - core index']
  #allocation1 [shape = 'u32[72,128]{1,0:T(1,128)}', space=vmem, size = 0x9000, scoped, tag = 'internal scratch']
  #allocation2 [shape = 'f32[16,128]{1,0:T(8,128)}', space=vmem, size = 0x2000, scoped, tag = 'scratch operand']
  %s0 = inlined_call_operand.vmem [shape: f32[2,16,128], index: 0, kind: input, shape index: {}]
  %s1 = inlined_call_operand.vmem [shape: f32[3,1,128], index: 1, kind: input, shape index: {}]
  %s2 = inlined_call_operand.vmem [shape: f32[3,1,128], index: 2, kind: input, shape index: {}]
  %s3 = inlined_call_operand.hbm [shape: bf16[3,128,256], index: 3, kind: input, shape index: {}]
  %s4 = inlined_call_operand.vmem [shape: f32[3,1,256], index: 4, kind: input, shape index: {}]
  %s5 = inlined_call_operand.vmem [shape: bf16[3,256,256], index: 5, kind: input, shape index: {}]
  %s6 = inlined_call_operand.vmem [shape: f32[3,1,256], index: 6, kind: input, shape index: {}]
  %s7 = inlined_call_operand.hbm [shape: bf16[3,256,256], index: 7, kind: input, shape index: {}]
  %s8 = inlined_call_operand.vmem [shape: f32[3,1,256], index: 8, kind: input, shape index: {}]
  %s9 = inlined_call_operand.vmem [shape: f32[3,1,256], index: 9, kind: input, shape index: {}]
  %s10 = inlined_call_operand.vmem [shape: f32[3,1,256], index: 10, kind: input, shape index: {}]
  %s11 = inlined_call_operand.vmem [shape: bf16[3,16,16], index: 11, kind: input, shape index: {}]
  %s12 = inlined_call_operand.vmem [shape: f32[3,16,1], index: 12, kind: input, shape index: {}]
  %s13 = inlined_call_operand.hbm [shape: bf16[3,256,128], index: 13, kind: input, shape index: {}]
  %s14 = inlined_call_operand.vmem [shape: f32[3,1,128], index: 14, kind: input, shape index: {}]
  %s15 = inlined_call_operand.vmem [shape: bf16[128,128], index: 15, kind: input, shape index: {}]
  %s16 = inlined_call_operand.vmem [shape: f32[1,128], index: 16, kind: input, shape index: {}]
  %s17 = inlined_call_operand.hbm [shape: f32[2,1,128], index: 17, kind: output, shape index: {}]
  %s18 = sld [smem:[#allocation0]]
  $region121: #{model_forward.1} parent=0
    _
  %s20 = ssub.s32 1, %s18
  %s21 = scalar_select 0, %s20, %s18
  $region1: #{model_forward.1} parent=0
    #allocation3 [shape = 'u8[131072]{0}', space=vmem, size = 0x20000, scoped, tag = 'input window, operand 3']
    #allocation4 [shape = 's32[2]{0}', space=sflag, size = 0x8, scoped, tag = 'scoped memory for model_forward.1']
    #allocation5 [shape = 's32[2]{0}', space=sflag, size = 0x8, scoped, tag = 'scoped memory for model_forward.1']
    #allocation6 [shape = 'u8[262144]{0}', space=vmem, size = 0x40000, scoped, tag = 'input window, operand 7']
    #allocation7 [shape = 's32[2]{0}', space=sflag, size = 0x8, scoped, tag = 'scoped memory for model_forward.1']
    #allocation8 [shape = 'u8[131072]{0}', space=vmem, size = 0x20000, scoped, tag = 'input window, operand 13']
    #allocation9 [shape = 'u8[1024]{0}', space=vmem, size = 0x400, scoped, tag = 'output window, operand 0']
    %22 = vsyncpa [#allocation4], 0
    %s23 = scalar_lea.sflag [#allocation4], 1
    %24 = vsyncpa %s23, 0
    %25 = vsyncpa [#allocation7], 0
    %s26 = scalar_lea.sflag [#allocation7], 1
    %27 = vsyncpa %s26, 0
    %28 = vsyncpa [#allocation5], 0
    %s29 = scalar_lea.sflag [#allocation5], 1
    %30 = vsyncpa %s29, 0
    loop: start=0, step=1, limit=8
    $region2: #{model_forward.1} parent=1 // loop_pre_header
      _
    $region3: #{model_forward.1} parent=1 // loop_header
      %s32 = sphi 0, %s36
      %p33 = scmp.ge.s32.totalorder %s32, 8
      %s39 = sphi 0, %s51
      %s40 = sphi 0, %s47
      %s41 = sphi 0, %s39
      %s42 = sphi 0, %s40
      %s43 = sphi 0, %s41
      %s44 = sphi 0, %s42
      %s54 = sphi 0, %s56
      %s57 = sphi 0, %s54
      %s58 = sphi 0, %s57
      %s74 = sphi 0, %s58
      %s80 = sphi 0, %s82
      %s83 = sphi 0, %s80
      %s84 = sphi 0, %s83
      %s100 = sphi 0, %s84
      %s106 = sphi 0, %s108
      %s109 = sphi 0, %s106
      %s110 = sphi 0, %s109
      %s126 = sphi 0, %s110
      %s132 = sphi 0, %s134
      %s135 = sphi 0, %s132
      %s136 = sphi 0, %s135
      %s152 = sphi 0, %s136
      %s158 = sphi 0, %s160
      %s161 = sphi 0, %s158
      %s162 = sphi 0, %s161
      %s178 = sphi 0, %s162
      %s184 = sphi 0, %s186
      %s187 = sphi 0, %s184
      %s188 = sphi 0, %s187
      %s204 = sphi 0, %s188
      %s210 = sphi 0, %s212
      %s213 = sphi 0, %s210
      %s214 = sphi 0, %s213
      %s230 = sphi 0, %s214
      %s236 = sphi 0, %s238
      %s239 = sphi 0, %s236
      %s240 = sphi 0, %s239
      %s256 = sphi 0, %s240
      %s262 = sphi 0, %s264
      %s265 = sphi 0, %s262
      %s266 = sphi 0, %s265
      %s282 = sphi 0, %s266
      %s288 = sphi 0, %s290
      %s291 = sphi 0, %s288
      %s292 = sphi 0, %s291
      %s308 = sphi 0, %s292
      %s314 = sphi 0, %s316
      %s317 = sphi 0, %s314
      %s318 = sphi 0, %s317
      %s334 = sphi 0, %s318
      %s340 = sphi 0, %s342
      %s343 = sphi 0, %s340
      %s344 = sphi 0, %s343
      %s360 = sphi 0, %s344
      %s366 = sphi 0, %s368
      %s369 = sphi 0, %s366
      %s370 = sphi 0, %s369
      %s386 = sphi 0, %s370
      %s392 = sphi 0, %s394
      %s395 = sphi 0, %s392
      %s396 = sphi 0, %s395
      %s412 = sphi 0, %s396
      %s418 = sphi 0, %s420
      %s421 = sphi 0, %s418
      %s422 = sphi 0, %s421
      %s438 = sphi 0, %s422
      %s442 = sphi 0, %s442
      %s444 = sphi 0, %s442
      %s445 = sphi 0, %s444
      %s459 = sphi 0, %s445
      %s463 = sphi 0, %s463
      %s465 = sphi 0, %s463
      %s466 = sphi 0, %s465
      %s480 = sphi 0, %s466
      %s486 = sphi 0, %s488
      %s489 = sphi 0, %s486
      %s490 = sphi 0, %s489
      %s506 = sphi 0, %s490
    $region4: #{model_forward.1} parent=1 // loop_header_branch
      %35 = sbr.rel (%p33) target = $region8
    $region5: #{model_forward.1} parent=1 // loop_body
      %s37 = ssub.s32 %s32, 1
      %s38 = ssub.s32 %s32, 2
      %s45 = sadd.s32 1, %s40
      %p46 = scmp.ge.s32.totalorder %s45, 3
      %s47 = scalar_select %p46, 0, %s45
      %s48 = sadd.s32 1, %s39
      %s49 = scalar_select %p46, %s48, %s39
      %p50 = scmp.ge.s32.totalorder %s49, 2
      %s51 = scalar_select %p50, 0, %s49
      %s52 = ssub.s32 %s39, %s51
      %p53 = scmp.eq.s32.totalorder %s52, 0
      %s55 = sadd.s32 %s54, 1
      %s56 = scalar_select %p53, %s54, %s55
      %p59 = pneg %p53
      %p60 = scmp.eq.s32.totalorder %s32, 5
      %p61 = por %p59, %p60
      %p62 = scmp.ne.s32.totalorder %s54, %s57
      %p63 = scmp.eq.s32.totalorder %s32, 0
      %p64 = por %p62, %p63
      %p65 = scmp.ne.s32.totalorder %s54, %s57
      %p66 = scmp.eq.s32.totalorder %s37, 5
      %p67 = por %p65, %p66
      %p68 = scmp.ne.s32.totalorder %s57, %s58
      %p69 = scmp.eq.s32.totalorder %s37, 0
      %p70 = por %p68, %p69
      %p71 = scmp.ne.s32.totalorder %s57, %s58
      %p72 = scmp.eq.s32.totalorder %s38, 5
      %p73 = por %p71, %p72
      %p75 = scmp.ne.s32.totalorder %s58, %s74
      %p76 = scmp.eq.s32.totalorder %s38, 0
      %p77 = por %p75, %p76
      %s78 = ssub.s32 %s40, %s47
      %p79 = scmp.eq.s32.totalorder %s78, 0
      %s81 = sadd.s32 %s80, 1
      %s82 = scalar_select %p79, %s80, %s81
      %p85 = pneg %p79
      %p86 = scmp.eq.s32.totalorder %s32, 5
      %p87 = por %p85, %p86
      %p88 = scmp.ne.s32.totalorder %s80, %s83
      %p89 = scmp.eq.s32.totalorder %s32, 0
      %p90 = por %p88, %p89
      %p91 = scmp.ne.s32.totalorder %s80, %s83
      %p92 = scmp.eq.s32.totalorder %s37, 5
      %p93 = por %p91, %p92
      %p94 = scmp.ne.s32.totalorder %s83, %s84
      %p95 = scmp.eq.s32.totalorder %s37, 0
      %p96 = por %p94, %p95
      %p97 = scmp.ne.s32.totalorder %s83, %s84
      %p98 = scmp.eq.s32.totalorder %s38, 5
      %p99 = por %p97, %p98
      %p101 = scmp.ne.s32.totalorder %s84, %s100
      %p102 = scmp.eq.s32.totalorder %s38, 0
      %p103 = por %p101, %p102
      %s104 = ssub.s32 %s40, %s47
      %p105 = scmp.eq.s32.totalorder %s104, 0
      %s107 = sadd.s32 %s106, 1
      %s108 = scalar_select %p105, %s106, %s107
      %p111 = pneg %p105
      %p112 = scmp.eq.s32.totalorder %s32, 5
      %p113 = por %p111, %p112
      %p114 = scmp.ne.s32.totalorder %s106, %s109
      %p115 = scmp.eq.s32.totalorder %s32, 0
      %p116 = por %p114, %p115
      %p117 = scmp.ne.s32.totalorder %s106, %s109
      %p118 = scmp.eq.s32.totalorder %s37, 5
      %p119 = por %p117, %p118
      %p120 = scmp.ne.s32.totalorder %s109, %s110
      %p121 = scmp.eq.s32.totalorder %s37, 0
      %p122 = por %p120, %p121
      %p123 = scmp.ne.s32.totalorder %s109, %s110
      %p124 = scmp.eq.s32.totalorder %s38, 5
      %p125 = por %p123, %p124
      %p127 = scmp.ne.s32.totalorder %s110, %s126
      %p128 = scmp.eq.s32.totalorder %s38, 0
      %p129 = por %p127, %p128
      %s130 = ssub.s32 %s40, %s47
      %p131 = scmp.eq.s32.totalorder %s130, 0
      %s133 = sadd.s32 %s132, 1
      %s134 = scalar_select %p131, %s132, %s133
      %p137 = pneg %p131
      %p138 = scmp.eq.s32.totalorder %s32, 5
      %p139 = por %p137, %p138
      %p140 = scmp.ne.s32.totalorder %s132, %s135
      %p141 = scmp.eq.s32.totalorder %s32, 0
      %p142 = por %p140, %p141
      %p143 = scmp.ne.s32.totalorder %s132, %s135
      %p144 = scmp.eq.s32.totalorder %s37, 5
      %p145 = por %p143, %p144
      %p146 = scmp.ne.s32.totalorder %s135, %s136
      %p147 = scmp.eq.s32.totalorder %s37, 0
      %p148 = por %p146, %p147
      %p149 = scmp.ne.s32.totalorder %s135, %s136
      %p150 = scmp.eq.s32.totalorder %s38, 5
      %p151 = por %p149, %p150
      %p153 = scmp.ne.s32.totalorder %s136, %s152
      %p154 = scmp.eq.s32.totalorder %s38, 0
      %p155 = por %p153, %p154
      %s156 = ssub.s32 %s40, %s47
      %p157 = scmp.eq.s32.totalorder %s156, 0
      %s159 = sadd.s32 %s158, 1
      %s160 = scalar_select %p157, %s158, %s159
      %p163 = pneg %p157
      %p164 = scmp.eq.s32.totalorder %s32, 5
      %p165 = por %p163, %p164
      %p166 = scmp.ne.s32.totalorder %s158, %s161
      %p167 = scmp.eq.s32.totalorder %s32, 0
      %p168 = por %p166, %p167
      %p169 = scmp.ne.s32.totalorder %s158, %s161
      %p170 = scmp.eq.s32.totalorder %s37, 5
      %p171 = por %p169, %p170
      %p172 = scmp.ne.s32.totalorder %s161, %s162
      %p173 = scmp.eq.s32.totalorder %s37, 0
      %p174 = por %p172, %p173
      %p175 = scmp.ne.s32.totalorder %s161, %s162
      %p176 = scmp.eq.s32.totalorder %s38, 5
      %p177 = por %p175, %p176
      %p179 = scmp.ne.s32.totalorder %s162, %s178
      %p180 = scmp.eq.s32.totalorder %s38, 0
      %p181 = por %p179, %p180
      %s182 = ssub.s32 %s40, %s47
      %p183 = scmp.eq.s32.totalorder %s182, 0
      %s185 = sadd.s32 %s184, 1
      %s186 = scalar_select %p183, %s184, %s185
      %p189 = pneg %p183
      %p190 = scmp.eq.s32.totalorder %s32, 5
      %p191 = por %p189, %p190
      %p192 = scmp.ne.s32.totalorder %s184, %s187
      %p193 = scmp.eq.s32.totalorder %s32, 0
      %p194 = por %p192, %p193
      %p195 = scmp.ne.s32.totalorder %s184, %s187
      %p196 = scmp.eq.s32.totalorder %s37, 5
      %p197 = por %p195, %p196
      %p198 = scmp.ne.s32.totalorder %s187, %s188
      %p199 = scmp.eq.s32.totalorder %s37, 0
      %p200 = por %p198, %p199
      %p201 = scmp.ne.s32.totalorder %s187, %s188
      %p202 = scmp.eq.s32.totalorder %s38, 5
      %p203 = por %p201, %p202
      %p205 = scmp.ne.s32.totalorder %s188, %s204
      %p206 = scmp.eq.s32.totalorder %s38, 0
      %p207 = por %p205, %p206
      %s208 = ssub.s32 %s40, %s47
      %p209 = scmp.eq.s32.totalorder %s208, 0
      %s211 = sadd.s32 %s210, 1
      %s212 = scalar_select %p209, %s210, %s211
      %p215 = pneg %p209
      %p216 = scmp.eq.s32.totalorder %s32, 5
      %p217 = por %p215, %p216
      %p218 = scmp.ne.s32.totalorder %s210, %s213
      %p219 = scmp.eq.s32.totalorder %s32, 0
      %p220 = por %p218, %p219
      %p221 = scmp.ne.s32.totalorder %s210, %s213
      %p222 = scmp.eq.s32.totalorder %s37, 5
      %p223 = por %p221, %p222
      %p224 = scmp.ne.s32.totalorder %s213, %s214
      %p225 = scmp.eq.s32.totalorder %s37, 0
      %p226 = por %p224, %p225
      %p227 = scmp.ne.s32.totalorder %s213, %s214
      %p228 = scmp.eq.s32.totalorder %s38, 5
      %p229 = por %p227, %p228
      %p231 = scmp.ne.s32.totalorder %s214, %s230
      %p232 = scmp.eq.s32.totalorder %s38, 0
      %p233 = por %p231, %p232
      %s234 = ssub.s32 %s40, %s47
      %p235 = scmp.eq.s32.totalorder %s234, 0
      %s237 = sadd.s32 %s236, 1
      %s238 = scalar_select %p235, %s236, %s237
      %p241 = pneg %p235
      %p242 = scmp.eq.s32.totalorder %s32, 5
      %p243 = por %p241, %p242
      %p244 = scmp.ne.s32.totalorder %s236, %s239
      %p245 = scmp.eq.s32.totalorder %s32, 0
      %p246 = por %p244, %p245
      %p247 = scmp.ne.s32.totalorder %s236, %s239
      %p248 = scmp.eq.s32.totalorder %s37, 5
      %p249 = por %p247, %p248
      %p250 = scmp.ne.s32.totalorder %s239, %s240
      %p251 = scmp.eq.s32.totalorder %s37, 0
      %p252 = por %p250, %p251
      %p253 = scmp.ne.s32.totalorder %s239, %s240
      %p254 = scmp.eq.s32.totalorder %s38, 5
      %p255 = por %p253, %p254
      %p257 = scmp.ne.s32.totalorder %s240, %s256
      %p258 = scmp.eq.s32.totalorder %s38, 0
      %p259 = por %p257, %p258
      %s260 = ssub.s32 %s40, %s47
      %p261 = scmp.eq.s32.totalorder %s260, 0
      %s263 = sadd.s32 %s262, 1
      %s264 = scalar_select %p261, %s262, %s263
      %p267 = pneg %p261
      %p268 = scmp.eq.s32.totalorder %s32, 5
      %p269 = por %p267, %p268
      %p270 = scmp.ne.s32.totalorder %s262, %s265
      %p271 = scmp.eq.s32.totalorder %s32, 0
      %p272 = por %p270, %p271
      %p273 = scmp.ne.s32.totalorder %s262, %s265
      %p274 = scmp.eq.s32.totalorder %s37, 5
      %p275 = por %p273, %p274
      %p276 = scmp.ne.s32.totalorder %s265, %s266
      %p277 = scmp.eq.s32.totalorder %s37, 0
      %p278 = por %p276, %p277
      %p279 = scmp.ne.s32.totalorder %s265, %s266
      %p280 = scmp.eq.s32.totalorder %s38, 5
      %p281 = por %p279, %p280
      %p283 = scmp.ne.s32.totalorder %s266, %s282
      %p284 = scmp.eq.s32.totalorder %s38, 0
      %p285 = por %p283, %p284
      %s286 = ssub.s32 %s40, %s47
      %p287 = scmp.eq.s32.totalorder %s286, 0
      %s289 = sadd.s32 %s288, 1
      %s290 = scalar_select %p287, %s288, %s289
      %p293 = pneg %p287
      %p294 = scmp.eq.s32.totalorder %s32, 5
      %p295 = por %p293, %p294
      %p296 = scmp.ne.s32.totalorder %s288, %s291
      %p297 = scmp.eq.s32.totalorder %s32, 0
      %p298 = por %p296, %p297
      %p299 = scmp.ne.s32.totalorder %s288, %s291
      %p300 = scmp.eq.s32.totalorder %s37, 5
      %p301 = por %p299, %p300
      %p302 = scmp.ne.s32.totalorder %s291, %s292
      %p303 = scmp.eq.s32.totalorder %s37, 0
      %p304 = por %p302, %p303
      %p305 = scmp.ne.s32.totalorder %s291, %s292
      %p306 = scmp.eq.s32.totalorder %s38, 5
      %p307 = por %p305, %p306
      %p309 = scmp.ne.s32.totalorder %s292, %s308
      %p310 = scmp.eq.s32.totalorder %s38, 0
      %p311 = por %p309, %p310
      %s312 = ssub.s32 %s40, %s47
      %p313 = scmp.eq.s32.totalorder %s312, 0
      %s315 = sadd.s32 %s314, 1
      %s316 = scalar_select %p313, %s314, %s315
      %p319 = pneg %p313
      %p320 = scmp.eq.s32.totalorder %s32, 5
      %p321 = por %p319, %p320
      %p322 = scmp.ne.s32.totalorder %s314, %s317
      %p323 = scmp.eq.s32.totalorder %s32, 0
      %p324 = por %p322, %p323
      %p325 = scmp.ne.s32.totalorder %s314, %s317
      %p326 = scmp.eq.s32.totalorder %s37, 5
      %p327 = por %p325, %p326
      %p328 = scmp.ne.s32.totalorder %s317, %s318
      %p329 = scmp.eq.s32.totalorder %s37, 0
      %p330 = por %p328, %p329
      %p331 = scmp.ne.s32.totalorder %s317, %s318
      %p332 = scmp.eq.s32.totalorder %s38, 5
      %p333 = por %p331, %p332
      %p335 = scmp.ne.s32.totalorder %s318, %s334
      %p336 = scmp.eq.s32.totalorder %s38, 0
      %p337 = por %p335, %p336
      %s338 = ssub.s32 %s40, %s47
      %p339 = scmp.eq.s32.totalorder %s338, 0
      %s341 = sadd.s32 %s340, 1
      %s342 = scalar_select %p339, %s340, %s341
      %p345 = pneg %p339
      %p346 = scmp.eq.s32.totalorder %s32, 5
      %p347 = por %p345, %p346
      %p348 = scmp.ne.s32.totalorder %s340, %s343
      %p349 = scmp.eq.s32.totalorder %s32, 0
      %p350 = por %p348, %p349
      %p351 = scmp.ne.s32.totalorder %s340, %s343
      %p352 = scmp.eq.s32.totalorder %s37, 5
      %p353 = por %p351, %p352
      %p354 = scmp.ne.s32.totalorder %s343, %s344
      %p355 = scmp.eq.s32.totalorder %s37, 0
      %p356 = por %p354, %p355
      %p357 = scmp.ne.s32.totalorder %s343, %s344
      %p358 = scmp.eq.s32.totalorder %s38, 5
      %p359 = por %p357, %p358
      %p361 = scmp.ne.s32.totalorder %s344, %s360
      %p362 = scmp.eq.s32.totalorder %s38, 0
      %p363 = por %p361, %p362
      %s364 = ssub.s32 %s40, %s47
      %p365 = scmp.eq.s32.totalorder %s364, 0
      %s367 = sadd.s32 %s366, 1
      %s368 = scalar_select %p365, %s366, %s367
      %p371 = pneg %p365
      %p372 = scmp.eq.s32.totalorder %s32, 5
      %p373 = por %p371, %p372
      %p374 = scmp.ne.s32.totalorder %s366, %s369
      %p375 = scmp.eq.s32.totalorder %s32, 0
      %p376 = por %p374, %p375
      %p377 = scmp.ne.s32.totalorder %s366, %s369
      %p378 = scmp.eq.s32.totalorder %s37, 5
      %p379 = por %p377, %p378
      %p380 = scmp.ne.s32.totalorder %s369, %s370
      %p381 = scmp.eq.s32.totalorder %s37, 0
      %p382 = por %p380, %p381
      %p383 = scmp.ne.s32.totalorder %s369, %s370
      %p384 = scmp.eq.s32.totalorder %s38, 5
      %p385 = por %p383, %p384
      %p387 = scmp.ne.s32.totalorder %s370, %s386
      %p388 = scmp.eq.s32.totalorder %s38, 0
      %p389 = por %p387, %p388
      %s390 = ssub.s32 %s40, %s47
      %p391 = scmp.eq.s32.totalorder %s390, 0
      %s393 = sadd.s32 %s392, 1
      %s394 = scalar_select %p391, %s392, %s393
      %p397 = pneg %p391
      %p398 = scmp.eq.s32.totalorder %s32, 5
      %p399 = por %p397, %p398
      %p400 = scmp.ne.s32.totalorder %s392, %s395
      %p401 = scmp.eq.s32.totalorder %s32, 0
      %p402 = por %p400, %p401
      %p403 = scmp.ne.s32.totalorder %s392, %s395
      %p404 = scmp.eq.s32.totalorder %s37, 5
      %p405 = por %p403, %p404
      %p406 = scmp.ne.s32.totalorder %s395, %s396
      %p407 = scmp.eq.s32.totalorder %s37, 0
      %p408 = por %p406, %p407
      %p409 = scmp.ne.s32.totalorder %s395, %s396
      %p410 = scmp.eq.s32.totalorder %s38, 5
      %p411 = por %p409, %p410
      %p413 = scmp.ne.s32.totalorder %s396, %s412
      %p414 = scmp.eq.s32.totalorder %s38, 0
      %p415 = por %p413, %p414
      %s416 = ssub.s32 %s40, %s47
      %p417 = scmp.eq.s32.totalorder %s416, 0
      %s419 = sadd.s32 %s418, 1
      %s420 = scalar_select %p417, %s418, %s419
      %p423 = pneg %p417
      %p424 = scmp.eq.s32.totalorder %s32, 5
      %p425 = por %p423, %p424
      %p426 = scmp.ne.s32.totalorder %s418, %s421
      %p427 = scmp.eq.s32.totalorder %s32, 0
      %p428 = por %p426, %p427
      %p429 = scmp.ne.s32.totalorder %s418, %s421
      %p430 = scmp.eq.s32.totalorder %s37, 5
      %p431 = por %p429, %p430
      %p432 = scmp.ne.s32.totalorder %s421, %s422
      %p433 = scmp.eq.s32.totalorder %s37, 0
      %p434 = por %p432, %p433
      %p435 = scmp.ne.s32.totalorder %s421, %s422
      %p436 = scmp.eq.s32.totalorder %s38, 5
      %p437 = por %p435, %p436
      %p439 = scmp.ne.s32.totalorder %s422, %s438
      %p440 = scmp.eq.s32.totalorder %s38, 0
      %p441 = por %p439, %p440
      %s443 = sadd.s32 %s442, 1
      %p446 = scmp.eq.s32.totalorder %s32, 5
      %p447 = scmp.ne.s32.totalorder %s442, %s444
      %p448 = scmp.eq.s32.totalorder %s32, 0
      %p449 = por %p447, %p448
      %p450 = scmp.ne.s32.totalorder %s442, %s444
      %p451 = scmp.eq.s32.totalorder %s37, 5
      %p452 = por %p450, %p451
      %p453 = scmp.ne.s32.totalorder %s444, %s445
      %p454 = scmp.eq.s32.totalorder %s37, 0
      %p455 = por %p453, %p454
      %p456 = scmp.ne.s32.totalorder %s444, %s445
      %p457 = scmp.eq.s32.totalorder %s38, 5
      %p458 = por %p456, %p457
      %p460 = scmp.ne.s32.totalorder %s445, %s459
      %p461 = scmp.eq.s32.totalorder %s38, 0
      %p462 = por %p460, %p461
      %s464 = sadd.s32 %s463, 1
      %p467 = scmp.eq.s32.totalorder %s32, 5
      %p468 = scmp.ne.s32.totalorder %s463, %s465
      %p469 = scmp.eq.s32.totalorder %s32, 0
      %p470 = por %p468, %p469
      %p471 = scmp.ne.s32.totalorder %s463, %s465
      %p472 = scmp.eq.s32.totalorder %s37, 5
      %p473 = por %p471, %p472
      %p474 = scmp.ne.s32.totalorder %s465, %s466
      %p475 = scmp.eq.s32.totalorder %s37, 0
      %p476 = por %p474, %p475
      %p477 = scmp.ne.s32.totalorder %s465, %s466
      %p478 = scmp.eq.s32.totalorder %s38, 5
      %p479 = por %p477, %p478
      %p481 = scmp.ne.s32.totalorder %s466, %s480
      %p482 = scmp.eq.s32.totalorder %s38, 0
      %p483 = por %p481, %p482
      %s484 = ssub.s32 %s39, %s51
      %p485 = scmp.eq.s32.totalorder %s484, 0
      %s487 = sadd.s32 %s486, 1
      %s488 = scalar_select %p485, %s486, %s487
      %p491 = pneg %p485
      %p492 = scmp.eq.s32.totalorder %s32, 5
      %p493 = por %p491, %p492
      %p494 = scmp.ne.s32.totalorder %s486, %s489
      %p495 = scmp.eq.s32.totalorder %s32, 0
      %p496 = por %p494, %p495
      %p497 = scmp.ne.s32.totalorder %s486, %s489
      %p498 = scmp.eq.s32.totalorder %s37, 5
      %p499 = por %p497, %p498
      %p500 = scmp.ne.s32.totalorder %s489, %s490
      %p501 = scmp.eq.s32.totalorder %s37, 0
      %p502 = por %p500, %p501
      %p503 = scmp.ne.s32.totalorder %s489, %s490
      %p504 = scmp.eq.s32.totalorder %s38, 5
      %p505 = por %p503, %p504
      %p507 = scmp.ne.s32.totalorder %s490, %s506
      %p508 = scmp.eq.s32.totalorder %s38, 0
      %p509 = por %p507, %p508
      %p510 = scmp.le.s32.totalorder 1, %s32
      %p511 = scmp.lt.s32.totalorder %s32, 7
      %p512 = pnand %p510, %p511
      %p513 = pneg %p512
      // Predicated region
      $region9: #{model_forward.1} parent=5 // pred_check
        _
      $region10: #{model_forward.1} parent=5 // pred_check_branch
        %515 = sbr.rel (%p512) target = $region12
      $region11: #{model_forward.1} parent=5 // pred_region
        %s516 = ssub.s32 %s32, 1
        // Predicated region
        $region13: #{model_forward.1} parent=11 // pred_check
          %p517 = pneg %p455
        $region14: #{model_forward.1} parent=11 // pred_check_branch
          %519 = sbr.rel (%p517) target = $region16
        $region15: #{model_forward.1} parent=11 // pred_region
          _
        $region16: #{model_forward.1} parent=11 // pred_fallthru
          _
        // Predicated region
        $region17: #{model_forward.1} parent=11 // pred_check
          %p520 = pneg %p476
        $region18: #{model_forward.1} parent=11 // pred_check_branch
          %522 = sbr.rel (%p520) target = $region20
        $region19: #{model_forward.1} parent=11 // pred_region
          _
        $region20: #{model_forward.1} parent=11 // pred_fallthru
          _
      $region12: #{model_forward.1} parent=5 // pred_fallthru
        _
      %p523 = scmp.lt.s32.totalorder %s32, 6
      // Predicated region
      $region21: #{model_forward.1} parent=5 // pred_check
        %p524 = pneg %p523
      $region22: #{model_forward.1} parent=5 // pred_check_branch
        %526 = sbr.rel (%p524) target = $region24
      $region23: #{model_forward.1} parent=5 // pred_region
        // Predicated region
        $region25: #{model_forward.1} parent=23 // pred_check
          %p527 = pneg %p64
        $region26: #{model_forward.1} parent=23 // pred_check_branch
          %529 = sbr.rel (%p527) target = $region28
        $region27: #{model_forward.1} parent=23 // pred_region
          %p530 = scmp.lt.s32.totalorder %s39, 1
          %s531 = scalar_select %p530, %s39, 1
          %s532 = smul.addr %s531, 2
          %s533 = smul.addr %s532, 8
          %s534 = scalar_lea.vmem %s0, %s533
        $region28: #{model_forward.1} parent=23 // pred_fallthru
          _
        // Predicated region
        $region29: #{model_forward.1} parent=23 // pred_check
          %p535 = pneg %p90
        $region30: #{model_forward.1} parent=23 // pred_check_branch
          %537 = sbr.rel (%p535) target = $region32
        $region31: #{model_forward.1} parent=23 // pred_region
          %p538 = scmp.lt.s32.totalorder %s40, 2
          %s539 = scalar_select %p538, %s40, 2
          %s540 = scalar_lea.vmem %s1, %s539
        $region32: #{model_forward.1} parent=23 // pred_fallthru
          _
        // Predicated region
        $region33: #{model_forward.1} parent=23 // pred_check
          %p541 = pneg %p116
        $region34: #{model_forward.1} parent=23 // pred_check_branch
          %543 = sbr.rel (%p541) target = $region36
        $region35: #{model_forward.1} parent=23 // pred_region
          %p544 = scmp.lt.s32.totalorder %s40, 2
          %s545 = scalar_select %p544, %s40, 2
          %s546 = scalar_lea.vmem %s2, %s545
        $region36: #{model_forward.1} parent=23 // pred_fallthru
          _
        // Predicated region
        $region37: #{model_forward.1} parent=23 // pred_check
          %p547 = pneg %p142
        $region38: #{model_forward.1} parent=23 // pred_check_branch
          %549 = sbr.rel (%p547) target = $region40
        $region39: #{model_forward.1} parent=23 // pred_region
          %s550 = sand.u32 %s132, 1
          %s551 = scalar_lea.sflag [#allocation4], %s550
          %s552 = sand.u32 %s132, 1
          %s553 = smul.addr %s552, 128
          %s554 = scalar_lea.vmem [#allocation3], %s553
          %556 = vsyncadd %s551, 0
          %s557 = smul.addr %s40, 32
          %s558 = smul.addr %s557, 4
          %s559 = scalar_lea.hbm %s3, %s558
          %s560 = sshll.u32 %s559, 4
          %s561 = int_to_ptr.hbm [resolvable:$true] %s560
          %s562 = sshll.u32 %s554, 4
          %s563 = int_to_ptr.vmem [resolvable:$true] %s562
          %568 = dma.hbm_to_vmem [thread:$0]  %s561, 2048, %s563, %s551, 128, 128, 8
        $region40: #{model_forward.1} parent=23 // pred_fallthru
          _
        // Predicated region
        $region41: #{model_forward.1} parent=23 // pred_check
          %p569 = pneg %p168
        $region42: #{model_forward.1} parent=23 // pred_check_branch
          %571 = sbr.rel (%p569) target = $region44
        $region43: #{model_forward.1} parent=23 // pred_region
          %p572 = scmp.lt.s32.totalorder %s40, 2
          %s573 = scalar_select %p572, %s40, 2
          %s574 = smul.addr %s573, 2
          %s575 = scalar_lea.vmem %s4, %s574
        $region44: #{model_forward.1} parent=23 // pred_fallthru
          _
        // Predicated region
        $region45: #{model_forward.1} parent=23 // pred_check
          %p576 = pneg %p194
        $region46: #{model_forward.1} parent=23 // pred_check_branch
          %578 = sbr.rel (%p576) target = $region48
        $region47: #{model_forward.1} parent=23 // pred_region
          %p579 = scmp.lt.s32.totalorder %s40, 2
          %s580 = scalar_select %p579, %s40, 2
          %s581 = smul.addr %s580, 64
          %s582 = smul.addr %s581, 4
          %s583 = scalar_lea.vmem %s5, %s582
        $region48: #{model_forward.1} parent=23 // pred_fallthru
          _
        // Predicated region
        $region49: #{model_forward.1} parent=23 // pred_check
          %p584 = pneg %p220
        $region50: #{model_forward.1} parent=23 // pred_check_branch
          %586 = sbr.rel (%p584) target = $region52
        $region51: #{model_forward.1} parent=23 // pred_region
          %p587 = scmp.lt.s32.totalorder %s40, 2
          %s588 = scalar_select %p587, %s40, 2
          %s589 = smul.addr %s588, 2
          %s590 = scalar_lea.vmem %s6, %s589
        $region52: #{model_forward.1} parent=23 // pred_fallthru
          _
        // Predicated region
        $region53: #{model_forward.1} parent=23 // pred_check
          %p591 = pneg %p246
        $region54: #{model_forward.1} parent=23 // pred_check_branch
          %593 = sbr.rel (%p591) target = $region56
        $region55: #{model_forward.1} parent=23 // pred_region
          %s594 = sand.u32 %s32, 1
          %s595 = scalar_lea.sflag [#allocation7], %s594
          %s596 = sand.u32 %s236, 1
          %s597 = smul.addr %s596, 256
          %s598 = scalar_lea.vmem [#allocation6], %s597
          %600 = vsyncadd %s595, 0
          %s601 = smul.addr %s40, 64
          %s602 = smul.addr %s601, 4
          %s603 = scalar_lea.hbm %s7, %s602
          %s604 = sshll.u32 %s603, 4
          %s605 = int_to_ptr.hbm [resolvable:$true] %s604
          %s606 = sshll.u32 %s598, 4
          %s607 = int_to_ptr.vmem [resolvable:$true] %s606
          %612 = dma.hbm_to_vmem [thread:$0]  %s605, 4096, %s607, %s595, 128, 128, 8
        $region56: #{model_forward.1} parent=23 // pred_fallthru
          _
        // Predicated region
        $region57: #{model_forward.1} parent=23 // pred_check
          %p613 = pneg %p272
        $region58: #{model_forward.1} parent=23 // pred_check_branch
          %615 = sbr.rel (%p613) target = $region60
        $region59: #{model_forward.1} parent=23 // pred_region
          %p616 = scmp.lt.s32.totalorder %s40, 2
          %s617 = scalar_select %p616, %s40, 2
          %s618 = smul.addr %s617, 2
          %s619 = scalar_lea.vmem %s8, %s618
        $region60: #{model_forward.1} parent=23 // pred_fallthru
          _
        // Predicated region
        $region61: #{model_forward.1} parent=23 // pred_check
          %p620 = pneg %p298
        $region62: #{model_forward.1} parent=23 // pred_check_branch
          %622 = sbr.rel (%p620) target = $region64
        $region63: #{model_forward.1} parent=23 // pred_region
          %p623 = scmp.lt.s32.totalorder %s40, 2
          %s624 = scalar_select %p623, %s40, 2
          %s625 = smul.addr %s624, 2
          %s626 = scalar_lea.vmem %s9, %s625
        $region64: #{model_forward.1} parent=23 // pred_fallthru
          _
        // Predicated region
        $region65: #{model_forward.1} parent=23 // pred_check
          %p627 = pneg %p324
        $region66: #{model_forward.1} parent=23 // pred_check_branch
          %629 = sbr.rel (%p627) target = $region68
        $region67: #{model_forward.1} parent=23 // pred_region
          %p630 = scmp.lt.s32.totalorder %s40, 2
          %s631 = scalar_select %p630, %s40, 2
          %s632 = smul.addr %s631, 2
          %s633 = scalar_lea.vmem %s10, %s632
        $region68: #{model_forward.1} parent=23 // pred_fallthru
          _
        // Predicated region
        $region69: #{model_forward.1} parent=23 // pred_check
          %p634 = pneg %p350
        $region70: #{model_forward.1} parent=23 // pred_check_branch
          %636 = sbr.rel (%p634) target = $region72
        $region71: #{model_forward.1} parent=23 // pred_region
          %p637 = scmp.lt.s32.totalorder %s40, 2
          %s638 = scalar_select %p637, %s40, 2
          %s639 = smul.addr %s638, 2
          %s640 = smul.addr %s639, 4
          %s641 = scalar_lea.vmem %s11, %s640
        $region72: #{model_forward.1} parent=23 // pred_fallthru
          _
        // Predicated region
        $region73: #{model_forward.1} parent=23 // pred_check
          %p642 = pneg %p376
        $region74: #{model_forward.1} parent=23 // pred_check_branch
          %644 = sbr.rel (%p642) target = $region76
        $region75: #{model_forward.1} parent=23 // pred_region
          %p645 = scmp.lt.s32.totalorder %s40, 2
          %s646 = scalar_select %p645, %s40, 2
          %s647 = smul.addr %s646, 2
          %s648 = smul.addr %s647, 8
          %s649 = scalar_lea.vmem %s12, %s648
        $region76: #{model_forward.1} parent=23 // pred_fallthru
          _
        // Predicated region
        $region77: #{model_forward.1} parent=23 // pred_check
          %p650 = pneg %p402
        $region78: #{model_forward.1} parent=23 // pred_check_branch
          %652 = sbr.rel (%p650) target = $region80
        $region79: #{model_forward.1} parent=23 // pred_region
          %s653 = sand.u32 %s32, 1
          %s654 = scalar_lea.sflag [#allocation7], %s653
          %s655 = sand.u32 %s392, 1
          %s656 = smul.addr %s655, 128
          %s657 = scalar_lea.vmem [#allocation8], %s656
          %659 = vsyncadd %s654, 0
          %s660 = smul.addr %s40, 32
          %s661 = smul.addr %s660, 4
          %s662 = scalar_lea.hbm %s13, %s661
          %s663 = sshll.u32 %s662, 4
          %s664 = int_to_ptr.hbm [resolvable:$true] %s663
          %s665 = sshll.u32 %s657, 4
          %s666 = int_to_ptr.vmem [resolvable:$true] %s665
          %671 = dma.hbm_to_vmem [thread:$0]  %s664, 2048, %s666, %s654, 64, 64, 4
        $region80: #{model_forward.1} parent=23 // pred_fallthru
          _
        // Predicated region
        $region81: #{model_forward.1} parent=23 // pred_check
          %p672 = pneg %p428
        $region82: #{model_forward.1} parent=23 // pred_check_branch
          %674 = sbr.rel (%p672) target = $region84
        $region83: #{model_forward.1} parent=23 // pred_region
          %p675 = scmp.lt.s32.totalorder %s40, 2
          %s676 = scalar_select %p675, %s40, 2
          %s677 = scalar_lea.vmem %s14, %s676
        $region84: #{model_forward.1} parent=23 // pred_fallthru
          _
      $region24: #{model_forward.1} parent=5 // pred_fallthru
        _
      %p678 = scmp.le.s32.totalorder 1, %s32
      %p679 = scmp.lt.s32.totalorder %s32, 7
      %p680 = pnand %p678, %p679
      %p681 = pneg %p680
      // Predicated region
      $region85: #{model_forward.1} parent=5 // pred_check
        _
      $region86: #{model_forward.1} parent=5 // pred_check_branch
        %683 = sbr.rel (%p680) target = $region88
      $region87: #{model_forward.1} parent=5 // pred_region
        %s684 = ssub.s32 %s32, 1
        %s685 = sand.u32 %s135, 1
        %s686 = scalar_lea.sflag [#allocation4], %s685
        %s687 = sand.u32 %s135, 1
        %s688 = smul.addr %s687, 128
        %s689 = scalar_lea.vmem [#allocation3], %s688
        // Predicated region
        $region89: #{model_forward.1} parent=87 // pred_check
          %p690 = pneg %p148
        $region90: #{model_forward.1} parent=87 // pred_check_branch
          %692 = sbr.rel (%p690) target = $region92
        $region91: #{model_forward.1} parent=87 // pred_region
          %694 = dma.done %s686, 2048
        $region92: #{model_forward.1} parent=87 // pred_fallthru
          _
        %s695 = sand.u32 %s37, 1
        %s696 = scalar_lea.sflag [#allocation7], %s695
        %s697 = sand.u32 %s239, 1
        %s698 = smul.addr %s697, 256
        %s699 = scalar_lea.vmem [#allocation6], %s698
        // Predicated region
        $region93: #{model_forward.1} parent=87 // pred_check
          %p700 = pneg %p252
        $region94: #{model_forward.1} parent=87 // pred_check_branch
          %702 = sbr.rel (%p700) target = $region96
        $region95: #{model_forward.1} parent=87 // pred_region
          %704 = dma.done %s696, 4096
        $region96: #{model_forward.1} parent=87 // pred_fallthru
          _
        %s705 = sand.u32 %s37, 1
        %s706 = scalar_lea.sflag [#allocation7], %s705
        %s707 = sand.u32 %s395, 1
        %s708 = smul.addr %s707, 128
        %s709 = scalar_lea.vmem [#allocation8], %s708
        // Predicated region
        $region97: #{model_forward.1} parent=87 // pred_check
          %p710 = pneg %p408
        $region98: #{model_forward.1} parent=87 // pred_check_branch
          %712 = sbr.rel (%p710) target = $region100
        $region99: #{model_forward.1} parent=87 // pred_region
          %714 = dma.done %s706, 2048
        $region100: #{model_forward.1} parent=87 // pred_fallthru
          _
        %p715 = scmp.lt.s32.totalorder %s41, 1
        %s716 = scalar_select %p715, %s41, 1
        %s717 = smul.addr %s716, 2
        %s718 = smul.addr %s717, 8
        %s719 = scalar_lea.vmem %s0, %s718
        %p720 = pneg %p70
        %p721 = pneg %p67
        %p722 = scmp.lt.s32.totalorder %s42, 2
        %s723 = scalar_select %p722, %s42, 2
        %s724 = scalar_lea.vmem %s1, %s723
        %p725 = pneg %p96
        %p726 = pneg %p93
        %p727 = scmp.lt.s32.totalorder %s42, 2
        %s728 = scalar_select %p727, %s42, 2
        %s729 = scalar_lea.vmem %s2, %s728
        %p730 = pneg %p122
        %p731 = pneg %p119
        %s732 = sand.u32 %s135, 1
        %s733 = scalar_lea.sflag [#allocation4], %s732
        %s734 = sand.u32 %s135, 1
        %s735 = smul.addr %s734, 128
        %s736 = scalar_lea.vmem [#allocation3], %s735
        %p737 = pneg %p148
        %p738 = pneg %p145
        %p739 = scmp.lt.s32.totalorder %s42, 2
        %s740 = scalar_select %p739, %s42, 2
        %s741 = smul.addr %s740, 2
        %s742 = scalar_lea.vmem %s4, %s741
        %p743 = pneg %p174
        %p744 = pneg %p171
        %p745 = scmp.lt.s32.totalorder %s42, 2
        %s746 = scalar_select %p745, %s42, 2
        %s747 = smul.addr %s746, 64
        %s748 = smul.addr %s747, 4
        %s749 = scalar_lea.vmem %s5, %s748
        %p750 = pneg %p200
        %p751 = pneg %p197
        %p752 = scmp.lt.s32.totalorder %s42, 2
        %s753 = scalar_select %p752, %s42, 2
        %s754 = smul.addr %s753, 2
        %s755 = scalar_lea.vmem %s6, %s754
        %p756 = pneg %p226
        %p757 = pneg %p223
        %s758 = sand.u32 %s37, 1
        %s759 = scalar_lea.sflag [#allocation7], %s758
        %s760 = sand.u32 %s239, 1
        %s761 = smul.addr %s760, 256
        %s762 = scalar_lea.vmem [#allocation6], %s761
        %p763 = pneg %p252
        %p764 = pneg %p249
        %p765 = scmp.lt.s32.totalorder %s42, 2
        %s766 = scalar_select %p765, %s42, 2
        %s767 = smul.addr %s766, 2
        %s768 = scalar_lea.vmem %s8, %s767
        %p769 = pneg %p278
        %p770 = pneg %p275
        %p771 = scmp.lt.s32.totalorder %s42, 2
        %s772 = scalar_select %p771, %s42, 2
        %s773 = smul.addr %s772, 2
        %s774 = scalar_lea.vmem %s9, %s773
        %p775 = pneg %p304
        %p776 = pneg %p301
        %p777 = scmp.lt.s32.totalorder %s42, 2
        %s778 = scalar_select %p777, %s42, 2
        %s779 = smul.addr %s778, 2
        %s780 = scalar_lea.vmem %s10, %s779
        %p781 = pneg %p330
        %p782 = pneg %p327
        %p783 = scmp.lt.s32.totalorder %s42, 2
        %s784 = scalar_select %p783, %s42, 2
        %s785 = smul.addr %s784, 2
        %s786 = smul.addr %s785, 4
        %s787 = scalar_lea.vmem %s11, %s786
        %p788 = pneg %p356
        %p789 = pneg %p353
        %p790 = scmp.lt.s32.totalorder %s42, 2
        %s791 = scalar_select %p790, %s42, 2
        %s792 = smul.addr %s791, 2
        %s793 = smul.addr %s792, 8
        %s794 = scalar_lea.vmem %s12, %s793
        %p795 = pneg %p382
        %p796 = pneg %p379
        %s797 = sand.u32 %s37, 1
        %s798 = scalar_lea.sflag [#allocation7], %s797
        %s799 = sand.u32 %s395, 1
        %s800 = smul.addr %s799, 128
        %s801 = scalar_lea.vmem [#allocation8], %s800
        %p802 = pneg %p408
        %p803 = pneg %p405
        %p804 = scmp.lt.s32.totalorder %s42, 2
        %s805 = scalar_select %p804, %s42, 2
        %s806 = scalar_lea.vmem %s14, %s805
        %p807 = pneg %p434
        %p808 = pneg %p431
        %p809 = pneg %p455
        %p810 = pneg %p452
        %p811 = pneg %p476
        %p812 = pneg %p473
        %p813 = pneg %p502
        %p814 = pneg %p499
        %s815 = sand.u32 %s489, 1
        %s816 = scalar_lea.sflag [#allocation5], %s815
        %s817 = sand.u32 %s489, 1
        %s818 = scalar_lea.vmem [#allocation9], %s817
        %p819 = scmp.lt.s32.totalorder %s41, 1
        %s820 = scalar_select %p819, %s41, 1
        %s821 = smul.addr %s820, 2
        %s822 = smul.addr %s821, 8
        %s823 = scalar_lea.vmem %s0, %s822
        %p824 = scmp.lt.s32.totalorder %s42, 2
        %s825 = scalar_select %p824, %s42, 2
        %s826 = scalar_lea.vmem %s1, %s825
        %p827 = scmp.lt.s32.totalorder %s42, 2
        %s828 = scalar_select %p827, %s42, 2
        %s829 = scalar_lea.vmem %s2, %s828
        %p830 = scmp.lt.s32.totalorder %s42, 2
        %s831 = scalar_select %p830, %s42, 2
        %s832 = smul.addr %s831, 2
        %s833 = scalar_lea.vmem %s4, %s832
        %p834 = scmp.lt.s32.totalorder %s42, 2
        %s835 = scalar_select %p834, %s42, 2
        %s836 = smul.addr %s835, 64
        %s837 = smul.addr %s836, 4
        %s838 = scalar_lea.vmem %s5, %s837
        %p839 = scmp.lt.s32.totalorder %s42, 2
        %s840 = scalar_select %p839, %s42, 2
        %s841 = smul.addr %s840, 2
        %s842 = scalar_lea.vmem %s6, %s841
        %p843 = scmp.lt.s32.totalorder %s42, 2
        %s844 = scalar_select %p843, %s42, 2
        %s845 = smul.addr %s844, 2
        %s846 = scalar_lea.vmem %s8, %s845
        %p847 = scmp.lt.s32.totalorder %s42, 2
        %s848 = scalar_select %p847, %s42, 2
        %s849 = smul.addr %s848, 2
        %s850 = scalar_lea.vmem %s9, %s849
        %p851 = scmp.lt.s32.totalorder %s42, 2
        %s852 = scalar_select %p851, %s42, 2
        %s853 = smul.addr %s852, 2
        %s854 = scalar_lea.vmem %s10, %s853
        %p855 = scmp.lt.s32.totalorder %s42, 2
        %s856 = scalar_select %p855, %s42, 2
        %s857 = smul.addr %s856, 2
        %s858 = smul.addr %s857, 4
        %s859 = scalar_lea.vmem %s11, %s858
        %p860 = scmp.lt.s32.totalorder %s42, 2
        %s861 = scalar_select %p860, %s42, 2
        %s862 = smul.addr %s861, 2
        %s863 = smul.addr %s862, 8
        %s864 = scalar_lea.vmem %s12, %s863
        %p865 = scmp.lt.s32.totalorder %s42, 2
        %s866 = scalar_select %p865, %s42, 2
        %s867 = scalar_lea.vmem %s14, %s866
        %p869 = scmp.eq.s32.totalorder %s42, 0
        // Predicated region
        $region101: #{model_forward.1} parent=87 // pred_check
          %p870 = pneg %p869
        $region102: #{model_forward.1} parent=87 // pred_check_branch
          %872 = sbr.rel (%p870) target = $region104
        $region103: #{model_forward.1} parent=87 // pred_region
          %v873 = vld [vmem:[%s823] sm:$0xff]
          %v874 = vld [vmem:[%s823 + $0x8] sm:$0xff]
          %875 = vst [vmem:[#allocation2] sm:$0xff] %v873
          %876 = vst [vmem:[#allocation2 + $0x8] sm:$0xff] %v874
        $region104: #{model_forward.1} parent=87 // pred_fallthru
          _
        %v877 = vld [vmem:[#allocation2] sm:$0xff]
        %v878 = vld [vmem:[#allocation2 + $0x8] sm:$0xff]
        %v879 = vld [vmem:[%s826] sm:$0x1]
        %v880 = vld [vmem:[%s829] sm:$0x1]
        %881 = vadd.xlane.f32.xlu0 %v877
        %v882 = vpop.xlane.xlu0 %881
        %883 = vadd.xlane.f32.xlu0 %v878
        %v884 = vpop.xlane.xlu0 %883
        %v885 = vrcp.pop 128.0
        %v886 = vmul.f32 128.0, %v885
        %v887 = vsub.f32 1.0, %v886
        %v888 = vmul.f32 %v885, %v887
        %v889 = vadd.f32 %v885, %v888
        %vm890 = vweird.f32 %v885
        %v891 = vsel %vm890, %v885, %v889
        %v892 = vmul.f32 %v882, %v891
        %v893 = vmul.f32 %v884, %v891
        %v894 = vsub.f32 %v877, %v892
        %v895 = vsub.f32 %v878, %v893
        %v896 = vmul.f32 %v894, %v894
        %v897 = vmul.f32 %v895, %v895
        %898 = vadd.xlane.f32.xlu0 %v896
        %v899 = vpop.xlane.xlu0 %898
        %900 = vadd.xlane.f32.xlu0 %v897
        %v901 = vpop.xlane.xlu0 %900
        %v902 = vmul.f32 %v899, %v891
        %v903 = vmul.f32 %v901, %v891
        %v904 = vadd.f32 %v902, 1e-05
        %v905 = vadd.f32 %v903, 1e-05
        %v906 = vrsqrt.pop %v904
        %v907 = vmul.f32 %v906, %v904
        %v908 = vmul.f32 %v907, %v906
        %v909 = vmul.f32 0.5, %v908
        %v910 = vsub.f32 1.5, %v909
        %v911 = vmul.f32 %v906, %v910
        %vm912 = vweird.f32 %v904
        %vm913 = vweird.f32 %v906
        %vm914 = vmor %vm912, %vm913
        %v915 = vsel %vm914, %v906, %v911
        %v916 = vrsqrt.pop %v905
        %v917 = vmul.f32 %v916, %v905
        %v918 = vmul.f32 %v917, %v916
        %v919 = vmul.f32 0.5, %v918
        %v920 = vsub.f32 1.5, %v919
        %v921 = vmul.f32 %v916, %v920
        %vm922 = vweird.f32 %v905
        %vm923 = vweird.f32 %v916
        %vm924 = vmor %vm922, %vm923
        %v925 = vsel %vm924, %v916, %v921
        %v926 = vmul.f32 %v894, %v915
        %v927 = vmul.f32 %v895, %v925
        %v929 = vperm.slane %v879, 0
        %v931 = vmul.f32 %v926, %v929
        %v932 = vmul.f32 %v927, %v929
        %v934 = vperm.slane %v880, 0
        %v936 = vadd.f32 %v931, %v934
        %v937 = vadd.f32 %v932, %v934
        %v938 = vpack.c.bf16 %v937, %v936
        %v939 = vld [vmem:[%s689] sm:$0xff]
        %v940 = vld [vmem:[%s689 + $0x8] sm:$0xff]
        %v941 = vld [vmem:[%s689 + $0x10] sm:$0xff]
        %v942 = vld [vmem:[%s689 + $0x18] sm:$0xff]
        %v943 = vld [vmem:[%s689 + $0x20] sm:$0xff]
        %v944 = vld [vmem:[%s689 + $0x28] sm:$0xff]
        %v945 = vld [vmem:[%s689 + $0x30] sm:$0xff]
        %v946 = vld [vmem:[%s689 + $0x38] sm:$0xff]
        %v947 = vld [vmem:[%s689 + $0x40] sm:$0xff]
        %v948 = vld [vmem:[%s689 + $0x48] sm:$0xff]
        %v949 = vld [vmem:[%s689 + $0x50] sm:$0xff]
        %v950 = vld [vmem:[%s689 + $0x58] sm:$0xff]
        %v951 = vld [vmem:[%s689 + $0x60] sm:$0xff]
        %v952 = vld [vmem:[%s689 + $0x68] sm:$0xff]
        %v953 = vld [vmem:[%s689 + $0x70] sm:$0xff]
        %v954 = vld [vmem:[%s689 + $0x78] sm:$0xff]
        %v955 = vld [vmem:[%s833] sm:$0x3]
        %v957 = vperm.slane %v955, 0
        %v958 = vperm.slane %v955, 1
        %v977 = vunpack.c.l.b16 %v939
        %v978 = vunpack.c.h.b16 %v939
        %v979 = vunpack.c.l.b16 %v940
        %v980 = vunpack.c.h.b16 %v940
        %v981 = vunpack.c.l.b16 %v941
        %v982 = vunpack.c.h.b16 %v941
        %v983 = vunpack.c.l.b16 %v942
        %v984 = vunpack.c.h.b16 %v942
        %v985 = vunpack.c.l.b16 %v943
        %v986 = vunpack.c.h.b16 %v943
        %v987 = vunpack.c.l.b16 %v944
        %v988 = vunpack.c.h.b16 %v944
        %v989 = vunpack.c.l.b16 %v945
        %v990 = vunpack.c.h.b16 %v945
        %v991 = vunpack.c.l.b16 %v946
        %v992 = vunpack.c.h.b16 %v946
        %v993 = vunpack.c.l.b16 %v947
        %v994 = vunpack.c.h.b16 %v947
        %v995 = vunpack.c.l.b16 %v948
        %v996 = vunpack.c.h.b16 %v948
        %v997 = vunpack.c.l.b16 %v949
        %v998 = vunpack.c.h.b16 %v949
        %v999 = vunpack.c.l.b16 %v950
        %v1000 = vunpack.c.h.b16 %v950
        %v1001 = vunpack.c.l.b16 %v951
        %v1002 = vunpack.c.h.b16 %v951
        %v1003 = vunpack.c.l.b16 %v952
        %v1004 = vunpack.c.h.b16 %v952
        %v1005 = vunpack.c.l.b16 %v953
        %v1006 = vunpack.c.h.b16 %v953
        %v1007 = vunpack.c.l.b16 %v954
        %v1008 = vunpack.c.h.b16 %v954
        %v1009 = vpack.c.b16 %v979, %v977
        %v1010 = vpack.c.b16 %v980, %v978
        %v1011 = vpack.c.b16 %v983, %v981
        %v1012 = vpack.c.b16 %v984, %v982
        %v1013 = vpack.c.b16 %v987, %v985
        %v1014 = vpack.c.b16 %v988, %v986
        %v1015 = vpack.c.b16 %v991, %v989
        %v1016 = vpack.c.b16 %v992, %v990
        %v1017 = vpack.c.b16 %v995, %v993
        %v1018 = vpack.c.b16 %v996, %v994
        %v1019 = vpack.c.b16 %v999, %v997
        %v1020 = vpack.c.b16 %v1000, %v998
        %v1021 = vpack.c.b16 %v1003, %v1001
        %v1022 = vpack.c.b16 %v1004, %v1002
        %v1023 = vpack.c.b16 %v1007, %v1005
        %v1024 = vpack.c.b16 %v1008, %v1006
        %1041 = vmatpush.bf16.msra.mxu0 %v1023
        %1042 = vmatpush.bf16.msra.mxu0 %v1021
        %1043 = vmatpush.bf16.msra.mxu0 %v1019
        %1044 = vmatpush.bf16.msra.mxu0 %v1017
        %1045 = vmatpush.bf16.msra.mxu0 %v1015
        %1046 = vmatpush.bf16.msra.mxu0 %v1013
        %1047 = vmatpush.bf16.msra.mxu0 %v1011
        %1048 = vmatpush.bf16.msra.mxu0 %v1009
        %1049 = vmatmul.bf16.gmra.mxu0 %v938
        %v1050 = vpop.f32.mrf.mxu0
        %v1051 = vadd.f32 %v957, %v1050
        %v1052 = vpop.f32.mrf.mxu0
        %v1053 = vadd.f32 %v957, %v1052
        %1054 = vdwg.mxu0
        %1055 = vmatpush.bf16.msra.mxu0 %v1024
        %1056 = vmatpush.bf16.msra.mxu0 %v1022
        %1057 = vmatpush.bf16.msra.mxu0 %v1020
        %1058 = vmatpush.bf16.msra.mxu0 %v1018
        %1059 = vmatpush.bf16.msra.mxu0 %v1016
        %1060 = vmatpush.bf16.msra.mxu0 %v1014
        %1061 = vmatpush.bf16.msra.mxu0 %v1012
        %1062 = vmatpush.bf16.msra.mxu0 %v1010
        %1063 = vmatmul.bf16.gmra.mxu0 %v938
        %v1064 = vpop.f32.mrf.mxu0
        %v1065 = vadd.f32 %v958, %v1064
        %v1066 = vpop.f32.mrf.mxu0
        %v1067 = vadd.f32 %v958, %v1066
        %1068 = vdwg.mxu0
        %v1069 = vmul.f32 %v1051, 0.5
        %v1070 = vmul.f32 %v1065, 0.5
        %v1071 = vmul.f32 %v1053, 0.5
        %v1072 = vmul.f32 %v1067, 0.5
        %v1073 = vmul.f32 %v1051, 0.70710677
        %v1074 = vmul.f32 %v1065, 0.70710677
        %v1075 = vmul.f32 %v1053, 0.70710677
        %v1076 = vmul.f32 %v1067, 0.70710677
        %v1077 = vmul.f32 %v1073, %v1073
        %v1078 = vmin.f32 16.0, %v1077
        %v1079 = vmul.f32 %v1078, 2.1237322e-06
        %v1080 = vadd.f32 %v1079, 0.00028619796
        %v1081 = vmul.f32 %v1078, %v1080
        %v1082 = vadd.f32 %v1081, 0.0036580483
        %v1083 = vmul.f32 %v1078, %v1082
        %v1084 = vadd.f32 %v1083, 0.05243302
        %v1085 = vmul.f32 %v1078, %v1084
        %v1086 = vadd.f32 %v1085, 0.18741608
        %v1087 = vmul.f32 %v1078, %v1086
        %v1088 = vadd.f32 %v1087, 1.1283791
        %v1089 = vmul.f32 %v1073, %v1088
        %v1090 = vmul.f32 %v1078, 3.8918573e-05
        %v1091 = vadd.f32 %v1090, 0.001143296
        %v1092 = vmul.f32 %v1078, %v1091
        %v1093 = vadd.f32 %v1092, 0.014752088
        %v1094 = vmul.f32 %v1078, %v1093
        %v1095 = vadd.f32 %v1094, 0.112945676
        %v1096 = vmul.f32 %v1078, %v1095
        %v1097 = vadd.f32 %v1096, 0.4994258
        %v1098 = vmul.f32 %v1078, %v1097
        %v1099 = vadd.f32 %v1098, 1.0
        %v1100 = vrcp.pop %v1099
        %v1101 = vmul.f32 %v1099, %v1100
        %v1102 = vsub.f32 1.0, %v1101
        %v1103 = vmul.f32 %v1100, %v1102
        %v1104 = vadd.f32 %v1100, %v1103
        %vm1105 = vweird.f32 %v1099
        %vm1106 = vweird.f32 %v1100
        %vm1107 = vmor %vm1105, %vm1106
        %v1108 = vsel %vm1107, %v1100, %v1104
        %v1109 = vand.u32 2147483647, %v1099
        %vm1110 = vcmp.eq.f32.partialorder %v1109, 8.507059e+37
        %v1111 = vand.u32 %v1099, 2147483648
        %v1112 = vor.u32 1.1754944e-38, %v1111
        %v1113 = vsel %vm1110, %v1112, %v1108
        %v1114 = vmul.f32 %v1089, %v1113
        %v1115 = vmin.f32 %v1114, 1.0
        %v1116 = vmax.f32 %v1115, -1.0
        %v1117 = vmul.f32 %v1074, %v1074
        %v1118 = vmin.f32 16.0, %v1117
        %v1119 = vmul.f32 %v1118, 2.1237322e-06
        %v1120 = vadd.f32 %v1119, 0.00028619796
        %v1121 = vmul.f32 %v1118, %v1120
        %v1122 = vadd.f32 %v1121, 0.0036580483
        %v1123 = vmul.f32 %v1118, %v1122
        %v1124 = vadd.f32 %v1123, 0.05243302
        %v1125 = vmul.f32 %v1118, %v1124
        %v1126 = vadd.f32 %v1125, 0.18741608
        %v1127 = vmul.f32 %v1118, %v1126
        %v1128 = vadd.f32 %v1127, 1.1283791
        %v1129 = vmul.f32 %v1074, %v1128
        %v1130 = vmul.f32 %v1118, 3.8918573e-05
        %v1131 = vadd.f32 %v1130, 0.001143296
        %v1132 = vmul.f32 %v1118, %v1131
        %v1133 = vadd.f32 %v1132, 0.014752088
        %v1134 = vmul.f32 %v1118, %v1133
        %v1135 = vadd.f32 %v1134, 0.112945676
        %v1136 = vmul.f32 %v1118, %v1135
        %v1137 = vadd.f32 %v1136, 0.4994258
        %v1138 = vmul.f32 %v1118, %v1137
        %v1139 = vadd.f32 %v1138, 1.0
        %v1140 = vrcp.pop %v1139
        %v1141 = vmul.f32 %v1139, %v1140
        %v1142 = vsub.f32 1.0, %v1141
        %v1143 = vmul.f32 %v1140, %v1142
        %v1144 = vadd.f32 %v1140, %v1143
        %vm1145 = vweird.f32 %v1139
        %vm1146 = vweird.f32 %v1140
        %vm1147 = vmor %vm1145, %vm1146
        %v1148 = vsel %vm1147, %v1140, %v1144
        %v1149 = vand.u32 2147483647, %v1139
        %vm1150 = vcmp.eq.f32.partialorder %v1149, 8.507059e+37
        %v1151 = vand.u32 %v1139, 2147483648
        %v1152 = vor.u32 1.1754944e-38, %v1151
        %v1153 = vsel %vm1150, %v1152, %v1148
        %v1154 = vmul.f32 %v1129, %v1153
        %v1155 = vmin.f32 %v1154, 1.0
        %v1156 = vmax.f32 %v1155, -1.0
        %v1157 = vmul.f32 %v1075, %v1075
        %v1158 = vmin.f32 16.0, %v1157
        %v1159 = vmul.f32 %v1158, 2.1237322e-06
        %v1160 = vadd.f32 %v1159, 0.00028619796
        %v1161 = vmul.f32 %v1158, %v1160
        %v1162 = vadd.f32 %v1161, 0.0036580483
        %v1163 = vmul.f32 %v1158, %v1162
        %v1164 = vadd.f32 %v1163, 0.05243302
        %v1165 = vmul.f32 %v1158, %v1164
        %v1166 = vadd.f32 %v1165, 0.18741608
        %v1167 = vmul.f32 %v1158, %v1166
        %v1168 = vadd.f32 %v1167, 1.1283791
        %v1169 = vmul.f32 %v1075, %v1168
        %v1170 = vmul.f32 %v1158, 3.8918573e-05
        %v1171 = vadd.f32 %v1170, 0.001143296
        %v1172 = vmul.f32 %v1158, %v1171
        %v1173 = vadd.f32 %v1172, 0.014752088
        %v1174 = vmul.f32 %v1158, %v1173
        %v1175 = vadd.f32 %v1174, 0.112945676
        %v1176 = vmul.f32 %v1158, %v1175
        %v1177 = vadd.f32 %v1176, 0.4994258
        %v1178 = vmul.f32 %v1158, %v1177
        %v1179 = vadd.f32 %v1178, 1.0
        %v1180 = vrcp.pop %v1179
        %v1181 = vmul.f32 %v1179, %v1180
        %v1182 = vsub.f32 1.0, %v1181
        %v1183 = vmul.f32 %v1180, %v1182
        %v1184 = vadd.f32 %v1180, %v1183
        %vm1185 = vweird.f32 %v1179
        %vm1186 = vweird.f32 %v1180
        %vm1187 = vmor %vm1185, %vm1186
        %v1188 = vsel %vm1187, %v1180, %v1184
        %v1189 = vand.u32 2147483647, %v1179
        %vm1190 = vcmp.eq.f32.partialorder %v1189, 8.507059e+37
        %v1191 = vand.u32 %v1179, 2147483648
        %v1192 = vor.u32 1.1754944e-38, %v1191
        %v1193 = vsel %vm1190, %v1192, %v1188
        %v1194 = vmul.f32 %v1169, %v1193
        %v1195 = vmin.f32 %v1194, 1.0
        %v1196 = vmax.f32 %v1195, -1.0
        %v1197 = vmul.f32 %v1076, %v1076
        %v1198 = vmin.f32 16.0, %v1197
        %v1199 = vmul.f32 %v1198, 2.1237322e-06
        %v1200 = vadd.f32 %v1199, 0.00028619796
        %v1201 = vmul.f32 %v1198, %v1200
        %v1202 = vadd.f32 %v1201, 0.0036580483
        %v1203 = vmul.f32 %v1198, %v1202
        %v1204 = vadd.f32 %v1203, 0.05243302
        %v1205 = vmul.f32 %v1198, %v1204
        %v1206 = vadd.f32 %v1205, 0.18741608
        %v1207 = vmul.f32 %v1198, %v1206
        %v1208 = vadd.f32 %v1207, 1.1283791
        %v1209 = vmul.f32 %v1076, %v1208
        %v1210 = vmul.f32 %v1198, 3.8918573e-05
        %v1211 = vadd.f32 %v1210, 0.001143296
        %v1212 = vmul.f32 %v1198, %v1211
        %v1213 = vadd.f32 %v1212, 0.014752088
        %v1214 = vmul.f32 %v1198, %v1213
        %v1215 = vadd.f32 %v1214, 0.112945676
        %v1216 = vmul.f32 %v1198, %v1215
        %v1217 = vadd.f32 %v1216, 0.4994258
        %v1218 = vmul.f32 %v1198, %v1217
        %v1219 = vadd.f32 %v1218, 1.0
        %v1220 = vrcp.pop %v1219
        %v1221 = vmul.f32 %v1219, %v1220
        %v1222 = vsub.f32 1.0, %v1221
        %v1223 = vmul.f32 %v1220, %v1222
        %v1224 = vadd.f32 %v1220, %v1223
        %vm1225 = vweird.f32 %v1219
        %vm1226 = vweird.f32 %v1220
        %vm1227 = vmor %vm1225, %vm1226
        %v1228 = vsel %vm1227, %v1220, %v1224
        %v1229 = vand.u32 2147483647, %v1219
        %vm1230 = vcmp.eq.f32.partialorder %v1229, 8.507059e+37
        %v1231 = vand.u32 %v1219, 2147483648
        %v1232 = vor.u32 1.1754944e-38, %v1231
        %v1233 = vsel %vm1230, %v1232, %v1228
        %v1234 = vmul.f32 %v1209, %v1233
        %v1235 = vmin.f32 %v1234, 1.0
        %v1236 = vmax.f32 %v1235, -1.0
        %v1237 = vadd.f32 %v1116, 1.0
        %v1238 = vadd.f32 %v1156, 1.0
        %v1239 = vadd.f32 %v1196, 1.0
        %v1240 = vadd.f32 %v1236, 1.0
        %v1241 = vmul.f32 %v1069, %v1237
        %v1242 = vmul.f32 %v1070, %v1238
        %v1243 = vmul.f32 %v1071, %v1239
        %v1244 = vmul.f32 %v1072, %v1240
        %v1245 = vpack.c.bf16 %v1243, %v1241
        %v1246 = vpack.c.bf16 %v1244, %v1242
        %v1247 = vld [vmem:[%s699] sm:$0xff]
        %v1248 = vld [vmem:[%s699 + $0x8] sm:$0xff]
        %v1249 = vld [vmem:[%s699 + $0x10] sm:$0xff]
        %v1250 = vld [vmem:[%s699 + $0x18] sm:$0xff]
        %v1251 = vld [vmem:[%s699 + $0x20] sm:$0xff]
        %v1252 = vld [vmem:[%s699 + $0x28] sm:$0xff]
        %v1253 = vld [vmem:[%s699 + $0x30] sm:$0xff]
        %v1254 = vld [vmem:[%s699 + $0x38] sm:$0xff]
        %v1255 = vld [vmem:[%s699 + $0x40] sm:$0xff]
        %v1256 = vld [vmem:[%s699 + $0x48] sm:$0xff]
        %v1257 = vld [vmem:[%s699 + $0x50] sm:$0xff]
        %v1258 = vld [vmem:[%s699 + $0x58] sm:$0xff]
        %v1259 = vld [vmem:[%s699 + $0x60] sm:$0xff]
        %v1260 = vld [vmem:[%s699 + $0x68] sm:$0xff]
        %v1261 = vld [vmem:[%s699 + $0x70] sm:$0xff]
        %v1262 = vld [vmem:[%s699 + $0x78] sm:$0xff]
        %v1263 = vld [vmem:[%s699 + $0x80] sm:$0xff]
        %v1264 = vld [vmem:[%s699 + $0x88] sm:$0xff]
        %v1265 = vld [vmem:[%s699 + $0x90] sm:$0xff]
        %v1266 = vld [vmem:[%s699 + $0x98] sm:$0xff]
        %v1267 = vld [vmem:[%s699 + $0xa0] sm:$0xff]
        %v1268 = vld [vmem:[%s699 + $0xa8] sm:$0xff]
        %v1269 = vld [vmem:[%s699 + $0xb0] sm:$0xff]
        %v1270 = vld [vmem:[%s699 + $0xb8] sm:$0xff]
        %v1271 = vld [vmem:[%s699 + $0xc0] sm:$0xff]
        %v1272 = vld [vmem:[%s699 + $0xc8] sm:$0xff]
        %v1273 = vld [vmem:[%s699 + $0xd0] sm:$0xff]
        %v1274 = vld [vmem:[%s699 + $0xd8] sm:$0xff]
        %v1275 = vld [vmem:[%s699 + $0xe0] sm:$0xff]
        %v1276 = vld [vmem:[%s699 + $0xe8] sm:$0xff]
        %v1277 = vld [vmem:[%s699 + $0xf0] sm:$0xff]
        %v1278 = vld [vmem:[%s699 + $0xf8] sm:$0xff]
        %v1279 = vld [vmem:[%s846] sm:$0x3]
        %v1281 = vperm.slane %v1279, 0
        %v1282 = vperm.slane %v1279, 1
        %v1317 = vunpack.c.l.b16 %v1247
        %v1318 = vunpack.c.h.b16 %v1247
        %v1319 = vunpack.c.l.b16 %v1248
        %v1320 = vunpack.c.h.b16 %v1248
        %v1321 = vunpack.c.l.b16 %v1249
        %v1322 = vunpack.c.h.b16 %v1249
        %v1323 = vunpack.c.l.b16 %v1250
        %v1324 = vunpack.c.h.b16 %v1250
        %v1325 = vunpack.c.l.b16 %v1251
        %v1326 = vunpack.c.h.b16 %v1251
        %v1327 = vunpack.c.l.b16 %v1252
        %v1328 = vunpack.c.h.b16 %v1252
        %v1329 = vunpack.c.l.b16 %v1253
        %v1330 = vunpack.c.h.b16 %v1253
        %v1331 = vunpack.c.l.b16 %v1254
        %v1332 = vunpack.c.h.b16 %v1254
        %v1333 = vunpack.c.l.b16 %v1255
        %v1334 = vunpack.c.h.b16 %v1255
        %v1335 = vunpack.c.l.b16 %v1256
        %v1336 = vunpack.c.h.b16 %v1256
        %v1337 = vunpack.c.l.b16 %v1257
        %v1338 = vunpack.c.h.b16 %v1257
        %v1339 = vunpack.c.l.b16 %v1258
        %v1340 = vunpack.c.h.b16 %v1258
        %v1341 = vunpack.c.l.b16 %v1259
        %v1342 = vunpack.c.h.b16 %v1259
        %v1343 = vunpack.c.l.b16 %v1260
        %v1344 = vunpack.c.h.b16 %v1260
        %v1345 = vunpack.c.l.b16 %v1261
        %v1346 = vunpack.c.h.b16 %v1261
        %v1347 = vunpack.c.l.b16 %v1262
        %v1348 = vunpack.c.h.b16 %v1262
        %v1349 = vunpack.c.l.b16 %v1263
        %v1350 = vunpack.c.h.b16 %v1263
        %v1351 = vunpack.c.l.b16 %v1264
        %v1352 = vunpack.c.h.b16 %v1264
        %v1353 = vunpack.c.l.b16 %v1265
        %v1354 = vunpack.c.h.b16 %v1265
        %v1355 = vunpack.c.l.b16 %v1266
        %v1356 = vunpack.c.h.b16 %v1266
        %v1357 = vunpack.c.l.b16 %v1267
        %v1358 = vunpack.c.h.b16 %v1267
        %v1359 = vunpack.c.l.b16 %v1268
        %v1360 = vunpack.c.h.b16 %v1268
        %v1361 = vunpack.c.l.b16 %v1269
        %v1362 = vunpack.c.h.b16 %v1269
        %v1363 = vunpack.c.l.b16 %v1270
        %v1364 = vunpack.c.h.b16 %v1270
        %v1365 = vunpack.c.l.b16 %v1271
        %v1366 = vunpack.c.h.b16 %v1271
        %v1367 = vunpack.c.l.b16 %v1272
        %v1368 = vunpack.c.h.b16 %v1272
        %v1369 = vunpack.c.l.b16 %v1273
        %v1370 = vunpack.c.h.b16 %v1273
        %v1371 = vunpack.c.l.b16 %v1274
        %v1372 = vunpack.c.h.b16 %v1274
        %v1373 = vunpack.c.l.b16 %v1275
        %v1374 = vunpack.c.h.b16 %v1275
        %v1375 = vunpack.c.l.b16 %v1276
        %v1376 = vunpack.c.h.b16 %v1276
        %v1377 = vunpack.c.l.b16 %v1277
        %v1378 = vunpack.c.h.b16 %v1277
        %v1379 = vunpack.c.l.b16 %v1278
        %v1380 = vunpack.c.h.b16 %v1278
        %v1381 = vpack.c.b16 %v1319, %v1317
        %v1382 = vpack.c.b16 %v1320, %v1318
        %v1383 = vpack.c.b16 %v1323, %v1321
        %v1384 = vpack.c.b16 %v1324, %v1322
        %v1385 = vpack.c.b16 %v1327, %v1325
        %v1386 = vpack.c.b16 %v1328, %v1326
        %v1387 = vpack.c.b16 %v1331, %v1329
        %v1388 = vpack.c.b16 %v1332, %v1330
        %v1389 = vpack.c.b16 %v1335, %v1333
        %v1390 = vpack.c.b16 %v1336, %v1334
        %v1391 = vpack.c.b16 %v1339, %v1337
        %v1392 = vpack.c.b16 %v1340, %v1338
        %v1393 = vpack.c.b16 %v1343, %v1341
        %v1394 = vpack.c.b16 %v1344, %v1342
        %v1395 = vpack.c.b16 %v1347, %v1345
        %v1396 = vpack.c.b16 %v1348, %v1346
        %v1397 = vpack.c.b16 %v1351, %v1349
        %v1398 = vpack.c.b16 %v1352, %v1350
        %v1399 = vpack.c.b16 %v1355, %v1353
        %v1400 = vpack.c.b16 %v1356, %v1354
        %v1401 = vpack.c.b16 %v1359, %v1357
        %v1402 = vpack.c.b16 %v1360, %v1358
        %v1403 = vpack.c.b16 %v1363, %v1361
        %v1404 = vpack.c.b16 %v1364, %v1362
        %v1405 = vpack.c.b16 %v1367, %v1365
        %v1406 = vpack.c.b16 %v1368, %v1366
        %v1407 = vpack.c.b16 %v1371, %v1369
        %v1408 = vpack.c.b16 %v1372, %v1370
        %v1409 = vpack.c.b16 %v1375, %v1373
        %v1410 = vpack.c.b16 %v1376, %v1374
        %v1411 = vpack.c.b16 %v1379, %v1377
        %v1412 = vpack.c.b16 %v1380, %v1378
        %1445 = vmatpush.bf16.msra.mxu0 %v1395
        %1446 = vmatpush.bf16.msra.mxu0 %v1393
        %1447 = vmatpush.bf16.msra.mxu0 %v1391
        %1448 = vmatpush.bf16.msra.mxu0 %v1389
        %1449 = vmatpush.bf16.msra.mxu0 %v1387
        %1450 = vmatpush.bf16.msra.mxu0 %v1385
        %1451 = vmatpush.bf16.msra.mxu0 %v1383
        %1452 = vmatpush.bf16.msra.mxu0 %v1381
        %1453 = vmatmul.bf16.gmra.mxu0 %v1245
        %v1454 = vpop.f32.mrf.mxu0
        %v1455 = vadd.f32 %v1281, %v1454
        %v1456 = vpop.f32.mrf.mxu0
        %v1457 = vadd.f32 %v1281, %v1456
        %1458 = vdwg.mxu0
        %1459 = vmatpush.bf16.msra.mxu0 %v1411
        %1460 = vmatpush.bf16.msra.mxu0 %v1409
        %1461 = vmatpush.bf16.msra.mxu0 %v1407
        %1462 = vmatpush.bf16.msra.mxu0 %v1405
        %1463 = vmatpush.bf16.msra.mxu0 %v1403
        %1464 = vmatpush.bf16.msra.mxu0 %v1401
        %1465 = vmatpush.bf16.msra.mxu0 %v1399
        %1466 = vmatpush.bf16.msra.mxu0 %v1397
        %1467 = vmatmul.bf16.gmra.mxu0 %v1246
        %v1468 = vpop.f32.mrf.mxu0
        %v1469 = vadd.f32 %v1455, %v1468
        %v1470 = vpop.f32.mrf.mxu0
        %v1471 = vadd.f32 %v1457, %v1470
        %1472 = vdwg.mxu0
        %1473 = vmatpush.bf16.msra.mxu0 %v1396
        %1474 = vmatpush.bf16.msra.mxu0 %v1394
        %1475 = vmatpush.bf16.msra.mxu0 %v1392
        %1476 = vmatpush.bf16.msra.mxu0 %v1390
        %1477 = vmatpush.bf16.msra.mxu0 %v1388
        %1478 = vmatpush.bf16.msra.mxu0 %v1386
        %1479 = vmatpush.bf16.msra.mxu0 %v1384
        %1480 = vmatpush.bf16.msra.mxu0 %v1382
        %1481 = vmatmul.bf16.gmra.mxu0 %v1245
        %v1482 = vpop.f32.mrf.mxu0
        %v1483 = vadd.f32 %v1282, %v1482
        %v1484 = vpop.f32.mrf.mxu0
        %v1485 = vadd.f32 %v1282, %v1484
        %1486 = vdwg.mxu0
        %1487 = vmatpush.bf16.msra.mxu0 %v1412
        %1488 = vmatpush.bf16.msra.mxu0 %v1410
        %1489 = vmatpush.bf16.msra.mxu0 %v1408
        %1490 = vmatpush.bf16.msra.mxu0 %v1406
        %1491 = vmatpush.bf16.msra.mxu0 %v1404
        %1492 = vmatpush.bf16.msra.mxu0 %v1402
        %1493 = vmatpush.bf16.msra.mxu0 %v1400
        %1494 = vmatpush.bf16.msra.mxu0 %v1398
        %1495 = vmatmul.bf16.gmra.mxu0 %v1246
        %v1496 = vpop.f32.mrf.mxu0
        %v1497 = vadd.f32 %v1483, %v1496
        %v1498 = vpop.f32.mrf.mxu0
        %v1499 = vadd.f32 %v1485, %v1498
        %1500 = vdwg.mxu0
        %v1501 = vld [vmem:[%s850] sm:$0x3]
        %v1502 = vld [vmem:[%s854] sm:$0x3]
        %v1503 = vadd.f32 %v1469, %v1497
        %1504 = vadd.xlane.f32.xlu0 %v1503
        %v1505 = vpop.xlane.xlu0 %1504
        %v1506 = vadd.f32 %v1471, %v1499
        %1507 = vadd.xlane.f32.xlu0 %v1506
        %v1508 = vpop.xlane.xlu0 %1507
        %v1509 = vrcp.pop 256.0
        %v1510 = vmul.f32 256.0, %v1509
        %v1511 = vsub.f32 1.0, %v1510
        %v1512 = vmul.f32 %v1509, %v1511
        %v1513 = vadd.f32 %v1509, %v1512
        %vm1514 = vweird.f32 %v1509
        %v1515 = vsel %vm1514, %v1509, %v1513
        %v1516 = vmul.f32 %v1505, %v1515
        %v1517 = vmul.f32 %v1508, %v1515
        %v1518 = vsub.f32 %v1469, %v1516
        %v1519 = vsub.f32 %v1497, %v1516
        %v1520 = vsub.f32 %v1471, %v1517
        %v1521 = vsub.f32 %v1499, %v1517
        %v1522 = vmul.f32 %v1518, %v1518
        %v1523 = vmul.f32 %v1519, %v1519
        %v1524 = vmul.f32 %v1520, %v1520
        %v1525 = vmul.f32 %v1521, %v1521
        %v1526 = vadd.f32 %v1522, %v1523
        %1527 = vadd.xlane.f32.xlu0 %v1526
        %v1528 = vpop.xlane.xlu0 %1527
        %v1529 = vadd.f32 %v1524, %v1525
        %1530 = vadd.xlane.f32.xlu0 %v1529
        %v1531 = vpop.xlane.xlu0 %1530
        %v1532 = vmul.f32 %v1528, %v1515
        %v1533 = vmul.f32 %v1531, %v1515
        %v1534 = vadd.f32 %v1532, 1e-05
        %v1535 = vadd.f32 %v1533, 1e-05
        %v1536 = vrsqrt.pop %v1534
        %v1537 = vmul.f32 %v1536, %v1534
        %v1538 = vmul.f32 %v1537, %v1536
        %v1539 = vmul.f32 0.5, %v1538
        %v1540 = vsub.f32 1.5, %v1539
        %v1541 = vmul.f32 %v1536, %v1540
        %vm1542 = vweird.f32 %v1534
        %vm1543 = vweird.f32 %v1536
        %vm1544 = vmor %vm1542, %vm1543
        %v1545 = vsel %vm1544, %v1536, %v1541
        %v1546 = vrsqrt.pop %v1535
        %v1547 = vmul.f32 %v1546, %v1535
        %v1548 = vmul.f32 %v1547, %v1546
        %v1549 = vmul.f32 0.5, %v1548
        %v1550 = vsub.f32 1.5, %v1549
        %v1551 = vmul.f32 %v1546, %v1550
        %vm1552 = vweird.f32 %v1535
        %vm1553 = vweird.f32 %v1546
        %vm1554 = vmor %vm1552, %vm1553
        %v1555 = vsel %vm1554, %v1546, %v1551
        %v1556 = vmul.f32 %v1518, %v1545
        %v1557 = vmul.f32 %v1519, %v1545
        %v1558 = vmul.f32 %v1520, %v1555
        %v1559 = vmul.f32 %v1521, %v1555
        %v1561 = vperm.slane %v1501, 0
        %v1562 = vperm.slane %v1501, 1
        %v1565 = vmul.f32 %v1556, %v1561
        %v1566 = vmul.f32 %v1557, %v1562
        %v1567 = vmul.f32 %v1558, %v1561
        %v1568 = vmul.f32 %v1559, %v1562
        %v1570 = vperm.slane %v1502, 0
        %v1571 = vperm.slane %v1502, 1
        %v1574 = vadd.f32 %v1565, %v1570
        %v1575 = vadd.f32 %v1566, %v1571
        %v1576 = vadd.f32 %v1567, %v1570
        %v1577 = vadd.f32 %v1568, %v1571
        %v1578 = vpack.c.bf16 %v1576, %v1574
        %v1579 = vpack.c.bf16 %v1577, %v1575
        %v1580 = vld [vmem:[%s859] sm:$0xf]
        %v1581 = vld [vmem:[%s859 + $0x4] sm:$0xf]
        %v1582 = vld [vmem:[%s864] sm:$0xff]
        %v1583 = vld [vmem:[%s864 + $0x8] sm:$0xff]
        %1585 = vset.pattern.permute.xlu0 0
        %1586 = vperm.xlu0 %1585, %v1582
        %v1587 = vpop.permute.xlu0 %1586
        %1590 = vset.pattern.permute.xlu0 0
        %1591 = vperm.xlu0 %1590, %v1583
        %v1592 = vpop.permute.xlu0 %1591
        %v1596 = vunpack.c.l.b16 %v1580
        %v1597 = vunpack.c.l.b16 %v1581
        %v1598 = vpack.c.b16 %v1597, %v1596
        %vm1599 = vcmask 130048
        %v1601 = vsel %vm1599, %v1598, 0
        %1603 = vmatpush.bf16.msra.mxu0 0
        %1604 = vmatpush.bf16.msra.mxu0 0
        %1605 = vmatpush.bf16.msra.mxu0 0
        %1606 = vmatpush.bf16.msra.mxu0 0
        %1607 = vmatpush.bf16.msra.mxu0 0
        %1608 = vmatpush.bf16.msra.mxu0 0
        %1609 = vmatpush.bf16.msra.mxu0 0
        %1610 = vmatpush.bf16.msra.mxu0 %v1578
        %1611 = vmatmul.bf16.gmra.mxu0 %v1601
        %v1612 = vpop.f32.mrf.mxu0
        %v1613 = vadd.f32 %v1587, %v1612
        %v1614 = vpop.f32.mrf.mxu0
        %v1615 = vadd.f32 %v1592, %v1614
        %1616 = vdwg.mxu0
        %1617 = vmatpush.bf16.msra.mxu0 0
        %1618 = vmatpush.bf16.msra.mxu0 0
        %1619 = vmatpush.bf16.msra.mxu0 0
        %1620 = vmatpush.bf16.msra.mxu0 0
        %1621 = vmatpush.bf16.msra.mxu0 0
        %1622 = vmatpush.bf16.msra.mxu0 0
        %1623 = vmatpush.bf16.msra.mxu0 0
        %1624 = vmatpush.bf16.msra.mxu0 %v1579
        %1625 = vmatmul.bf16.gmra.mxu0 %v1601
        %v1626 = vpop.f32.mrf.mxu0
        %v1627 = vadd.f32 %v1587, %v1626
        %v1628 = vpop.f32.mrf.mxu0
        %v1629 = vadd.f32 %v1592, %v1628
        %1630 = vdwg.mxu0
        %v1631 = vld [vmem:[%s838] sm:$0xff]
        %v1632 = vld [vmem:[%s838 + $0x8] sm:$0xff]
        %v1633 = vld [vmem:[%s838 + $0x10] sm:$0xff]
        %v1634 = vld [vmem:[%s838 + $0x18] sm:$0xff]
        %v1635 = vld [vmem:[%s838 + $0x20] sm:$0xff]
        %v1636 = vld [vmem:[%s838 + $0x28] sm:$0xff]
        %v1637 = vld [vmem:[%s838 + $0x30] sm:$0xff]
        %v1638 = vld [vmem:[%s838 + $0x38] sm:$0xff]
        %v1639 = vld [vmem:[%s838 + $0x40] sm:$0xff]
        %v1640 = vld [vmem:[%s838 + $0x48] sm:$0xff]
        %v1641 = vld [vmem:[%s838 + $0x50] sm:$0xff]
        %v1642 = vld [vmem:[%s838 + $0x58] sm:$0xff]
        %v1643 = vld [vmem:[%s838 + $0x60] sm:$0xff]
        %v1644 = vld [vmem:[%s838 + $0x68] sm:$0xff]
        %v1645 = vld [vmem:[%s838 + $0x70] sm:$0xff]
        %v1646 = vld [vmem:[%s838 + $0x78] sm:$0xff]
        %v1647 = vld [vmem:[%s838 + $0x80] sm:$0xff]
        %v1648 = vld [vmem:[%s838 + $0x88] sm:$0xff]
        %v1649 = vld [vmem:[%s838 + $0x90] sm:$0xff]
        %v1650 = vld [vmem:[%s838 + $0x98] sm:$0xff]
        %v1651 = vld [vmem:[%s838 + $0xa0] sm:$0xff]
        %v1652 = vld [vmem:[%s838 + $0xa8] sm:$0xff]
        %v1653 = vld [vmem:[%s838 + $0xb0] sm:$0xff]
        %v1654 = vld [vmem:[%s838 + $0xb8] sm:$0xff]
        %v1655 = vld [vmem:[%s838 + $0xc0] sm:$0xff]
        %v1656 = vld [vmem:[%s838 + $0xc8] sm:$0xff]
        %v1657 = vld [vmem:[%s838 + $0xd0] sm:$0xff]
        %v1658 = vld [vmem:[%s838 + $0xd8] sm:$0xff]
        %v1659 = vld [vmem:[%s838 + $0xe0] sm:$0xff]
        %v1660 = vld [vmem:[%s838 + $0xe8] sm:$0xff]
        %v1661 = vld [vmem:[%s838 + $0xf0] sm:$0xff]
        %v1662 = vld [vmem:[%s838 + $0xf8] sm:$0xff]
        %v1663 = vld [vmem:[%s842] sm:$0x3]
        %v1665 = vperm.slane %v1663, 0
        %v1666 = vperm.slane %v1663, 1
        %v1701 = vunpack.c.l.b16 %v1631
        %v1702 = vunpack.c.h.b16 %v1631
        %v1703 = vunpack.c.l.b16 %v1632
        %v1704 = vunpack.c.h.b16 %v1632
        %v1705 = vunpack.c.l.b16 %v1633
        %v1706 = vunpack.c.h.b16 %v1633
        %v1707 = vunpack.c.l.b16 %v1634
        %v1708 = vunpack.c.h.b16 %v1634
        %v1709 = vunpack.c.l.b16 %v1635
        %v1710 = vunpack.c.h.b16 %v1635
        %v1711 = vunpack.c.l.b16 %v1636
        %v1712 = vunpack.c.h.b16 %v1636
        %v1713 = vunpack.c.l.b16 %v1637
        %v1714 = vunpack.c.h.b16 %v1637
        %v1715 = vunpack.c.l.b16 %v1638
        %v1716 = vunpack.c.h.b16 %v1638
        %v1717 = vunpack.c.l.b16 %v1639
        %v1718 = vunpack.c.h.b16 %v1639
        %v1719 = vunpack.c.l.b16 %v1640
        %v1720 = vunpack.c.h.b16 %v1640
        %v1721 = vunpack.c.l.b16 %v1641
        %v1722 = vunpack.c.h.b16 %v1641
        %v1723 = vunpack.c.l.b16 %v1642
        %v1724 = vunpack.c.h.b16 %v1642
        %v1725 = vunpack.c.l.b16 %v1643
        %v1726 = vunpack.c.h.b16 %v1643
        %v1727 = vunpack.c.l.b16 %v1644
        %v1728 = vunpack.c.h.b16 %v1644
        %v1729 = vunpack.c.l.b16 %v1645
        %v1730 = vunpack.c.h.b16 %v1645
        %v1731 = vunpack.c.l.b16 %v1646
        %v1732 = vunpack.c.h.b16 %v1646
        %v1733 = vunpack.c.l.b16 %v1647
        %v1734 = vunpack.c.h.b16 %v1647
        %v1735 = vunpack.c.l.b16 %v1648
        %v1736 = vunpack.c.h.b16 %v1648
        %v1737 = vunpack.c.l.b16 %v1649
        %v1738 = vunpack.c.h.b16 %v1649
        %v1739 = vunpack.c.l.b16 %v1650
        %v1740 = vunpack.c.h.b16 %v1650
        %v1741 = vunpack.c.l.b16 %v1651
        %v1742 = vunpack.c.h.b16 %v1651
        %v1743 = vunpack.c.l.b16 %v1652
        %v1744 = vunpack.c.h.b16 %v1652
        %v1745 = vunpack.c.l.b16 %v1653
        %v1746 = vunpack.c.h.b16 %v1653
        %v1747 = vunpack.c.l.b16 %v1654
        %v1748 = vunpack.c.h.b16 %v1654
        %v1749 = vunpack.c.l.b16 %v1655
        %v1750 = vunpack.c.h.b16 %v1655
        %v1751 = vunpack.c.l.b16 %v1656
        %v1752 = vunpack.c.h.b16 %v1656
        %v1753 = vunpack.c.l.b16 %v1657
        %v1754 = vunpack.c.h.b16 %v1657
        %v1755 = vunpack.c.l.b16 %v1658
        %v1756 = vunpack.c.h.b16 %v1658
        %v1757 = vunpack.c.l.b16 %v1659
        %v1758 = vunpack.c.h.b16 %v1659
        %v1759 = vunpack.c.l.b16 %v1660
        %v1760 = vunpack.c.h.b16 %v1660
        %v1761 = vunpack.c.l.b16 %v1661
        %v1762 = vunpack.c.h.b16 %v1661
        %v1763 = vunpack.c.l.b16 %v1662
        %v1764 = vunpack.c.h.b16 %v1662
        %v1765 = vpack.c.b16 %v1703, %v1701
        %v1766 = vpack.c.b16 %v1704, %v1702
        %v1767 = vpack.c.b16 %v1707, %v1705
        %v1768 = vpack.c.b16 %v1708, %v1706
        %v1769 = vpack.c.b16 %v1711, %v1709
        %v1770 = vpack.c.b16 %v1712, %v1710
        %v1771 = vpack.c.b16 %v1715, %v1713
        %v1772 = vpack.c.b16 %v1716, %v1714
        %v1773 = vpack.c.b16 %v1719, %v1717
        %v1774 = vpack.c.b16 %v1720, %v1718
        %v1775 = vpack.c.b16 %v1723, %v1721
        %v1776 = vpack.c.b16 %v1724, %v1722
        %v1777 = vpack.c.b16 %v1727, %v1725
        %v1778 = vpack.c.b16 %v1728, %v1726
        %v1779 = vpack.c.b16 %v1731, %v1729
        %v1780 = vpack.c.b16 %v1732, %v1730
        %v1781 = vpack.c.b16 %v1735, %v1733
        %v1782 = vpack.c.b16 %v1736, %v1734
        %v1783 = vpack.c.b16 %v1739, %v1737
        %v1784 = vpack.c.b16 %v1740, %v1738
        %v1785 = vpack.c.b16 %v1743, %v1741
        %v1786 = vpack.c.b16 %v1744, %v1742
        %v1787 = vpack.c.b16 %v1747, %v1745
        %v1788 = vpack.c.b16 %v1748, %v1746
        %v1789 = vpack.c.b16 %v1751, %v1749
        %v1790 = vpack.c.b16 %v1752, %v1750
        %v1791 = vpack.c.b16 %v1755, %v1753
        %v1792 = vpack.c.b16 %v1756, %v1754
        %v1793 = vpack.c.b16 %v1759, %v1757
        %v1794 = vpack.c.b16 %v1760, %v1758
        %v1795 = vpack.c.b16 %v1763, %v1761
        %v1796 = vpack.c.b16 %v1764, %v1762
        %1829 = vmatpush.bf16.msra.mxu0 %v1779
        %1830 = vmatpush.bf16.msra.mxu0 %v1777
        %1831 = vmatpush.bf16.msra.mxu0 %v1775
        %1832 = vmatpush.bf16.msra.mxu0 %v1773
        %1833 = vmatpush.bf16.msra.mxu0 %v1771
        %1834 = vmatpush.bf16.msra.mxu0 %v1769
        %1835 = vmatpush.bf16.msra.mxu0 %v1767
        %1836 = vmatpush.bf16.msra.mxu0 %v1765
        %1837 = vmatmul.bf16.gmra.mxu0 %v1245
        %v1838 = vpop.f32.mrf.mxu0
        %v1839 = vadd.f32 %v1665, %v1838
        %v1840 = vpop.f32.mrf.mxu0
        %v1841 = vadd.f32 %v1665, %v1840
        %1842 = vdwg.mxu0
        %1843 = vmatpush.bf16.msra.mxu0 %v1795
        %1844 = vmatpush.bf16.msra.mxu0 %v1793
        %1845 = vmatpush.bf16.msra.mxu0 %v1791
        %1846 = vmatpush.bf16.msra.mxu0 %v1789
        %1847 = vmatpush.bf16.msra.mxu0 %v1787
        %1848 = vmatpush.bf16.msra.mxu0 %v1785
        %1849 = vmatpush.bf16.msra.mxu0 %v1783
        %1850 = vmatpush.bf16.msra.mxu0 %v1781
        %1851 = vmatmul.bf16.gmra.mxu0 %v1246
        %v1852 = vpop.f32.mrf.mxu0
        %v1853 = vadd.f32 %v1839, %v1852
        %v1854 = vpop.f32.mrf.mxu0
        %v1855 = vadd.f32 %v1841, %v1854
        %1856 = vdwg.mxu0
        %1857 = vmatpush.bf16.msra.mxu0 %v1780
        %1858 = vmatpush.bf16.msra.mxu0 %v1778
        %1859 = vmatpush.bf16.msra.mxu0 %v1776
        %1860 = vmatpush.bf16.msra.mxu0 %v1774
        %1861 = vmatpush.bf16.msra.mxu0 %v1772
        %1862 = vmatpush.bf16.msra.mxu0 %v1770
        %1863 = vmatpush.bf16.msra.mxu0 %v1768
        %1864 = vmatpush.bf16.msra.mxu0 %v1766
        %1865 = vmatmul.bf16.gmra.mxu0 %v1245
        %v1866 = vpop.f32.mrf.mxu0
        %v1867 = vadd.f32 %v1666, %v1866
        %v1868 = vpop.f32.mrf.mxu0
        %v1869 = vadd.f32 %v1666, %v1868
        %1870 = vdwg.mxu0
        %1871 = vmatpush.bf16.msra.mxu0 %v1796
        %1872 = vmatpush.bf16.msra.mxu0 %v1794
        %1873 = vmatpush.bf16.msra.mxu0 %v1792
        %1874 = vmatpush.bf16.msra.mxu0 %v1790
        %1875 = vmatpush.bf16.msra.mxu0 %v1788
        %1876 = vmatpush.bf16.msra.mxu0 %v1786
        %1877 = vmatpush.bf16.msra.mxu0 %v1784
        %1878 = vmatpush.bf16.msra.mxu0 %v1782
        %1879 = vmatmul.bf16.gmra.mxu0 %v1246
        %v1880 = vpop.f32.mrf.mxu0
        %v1881 = vadd.f32 %v1867, %v1880
        %v1882 = vpop.f32.mrf.mxu0
        %v1883 = vadd.f32 %v1869, %v1882
        %1884 = vdwg.mxu0
        %v1885 = vmul.f32 %v1853, %v1613
        %v1886 = vmul.f32 %v1881, %v1627
        %v1887 = vmul.f32 %v1855, %v1615
        %v1888 = vmul.f32 %v1883, %v1629
        %v1889 = vpack.c.bf16 %v1887, %v1885
        %v1890 = vpack.c.bf16 %v1888, %v1886
        %v1891 = vld [vmem:[%s709] sm:$0xf]
        %v1892 = vld [vmem:[%s709 + $0x4] sm:$0xf]
        %v1893 = vld [vmem:[%s709 + $0x8] sm:$0xf]
        %v1894 = vld [vmem:[%s709 + $0xc] sm:$0xf]
        %v1895 = vld [vmem:[%s709 + $0x10] sm:$0xf]
        %v1896 = vld [vmem:[%s709 + $0x14] sm:$0xf]
        %v1897 = vld [vmem:[%s709 + $0x18] sm:$0xf]
        %v1898 = vld [vmem:[%s709 + $0x1c] sm:$0xf]
        %v1899 = vld [vmem:[%s709 + $0x20] sm:$0xf]
        %v1900 = vld [vmem:[%s709 + $0x24] sm:$0xf]
        %v1901 = vld [vmem:[%s709 + $0x28] sm:$0xf]
        %v1902 = vld [vmem:[%s709 + $0x2c] sm:$0xf]
        %v1903 = vld [vmem:[%s709 + $0x30] sm:$0xf]
        %v1904 = vld [vmem:[%s709 + $0x34] sm:$0xf]
        %v1905 = vld [vmem:[%s709 + $0x38] sm:$0xf]
        %v1906 = vld [vmem:[%s709 + $0x3c] sm:$0xf]
        %v1907 = vld [vmem:[%s709 + $0x40] sm:$0xf]
        %v1908 = vld [vmem:[%s709 + $0x44] sm:$0xf]
        %v1909 = vld [vmem:[%s709 + $0x48] sm:$0xf]
        %v1910 = vld [vmem:[%s709 + $0x4c] sm:$0xf]
        %v1911 = vld [vmem:[%s709 + $0x50] sm:$0xf]
        %v1912 = vld [vmem:[%s709 + $0x54] sm:$0xf]
        %v1913 = vld [vmem:[%s709 + $0x58] sm:$0xf]
        %v1914 = vld [vmem:[%s709 + $0x5c] sm:$0xf]
        %v1915 = vld [vmem:[%s709 + $0x60] sm:$0xf]
        %v1916 = vld [vmem:[%s709 + $0x64] sm:$0xf]
        %v1917 = vld [vmem:[%s709 + $0x68] sm:$0xf]
        %v1918 = vld [vmem:[%s709 + $0x6c] sm:$0xf]
        %v1919 = vld [vmem:[%s709 + $0x70] sm:$0xf]
        %v1920 = vld [vmem:[%s709 + $0x74] sm:$0xf]
        %v1921 = vld [vmem:[%s709 + $0x78] sm:$0xf]
        %v1922 = vld [vmem:[%s709 + $0x7c] sm:$0xf]
        %v1955 = vunpack.c.l.b16 %v1891
        %v1956 = vunpack.c.l.b16 %v1892
        %v1957 = vunpack.c.l.b16 %v1893
        %v1958 = vunpack.c.l.b16 %v1894
        %v1959 = vunpack.c.l.b16 %v1895
        %v1960 = vunpack.c.l.b16 %v1896
        %v1961 = vunpack.c.l.b16 %v1897
        %v1962 = vunpack.c.l.b16 %v1898
        %v1963 = vunpack.c.l.b16 %v1899
        %v1964 = vunpack.c.l.b16 %v1900
        %v1965 = vunpack.c.l.b16 %v1901
        %v1966 = vunpack.c.l.b16 %v1902
        %v1967 = vunpack.c.l.b16 %v1903
        %v1968 = vunpack.c.l.b16 %v1904
        %v1969 = vunpack.c.l.b16 %v1905
        %v1970 = vunpack.c.l.b16 %v1906
        %v1971 = vunpack.c.l.b16 %v1907
        %v1972 = vunpack.c.l.b16 %v1908
        %v1973 = vunpack.c.l.b16 %v1909
        %v1974 = vunpack.c.l.b16 %v1910
        %v1975 = vunpack.c.l.b16 %v1911
        %v1976 = vunpack.c.l.b16 %v1912
        %v1977 = vunpack.c.l.b16 %v1913
        %v1978 = vunpack.c.l.b16 %v1914
        %v1979 = vunpack.c.l.b16 %v1915
        %v1980 = vunpack.c.l.b16 %v1916
        %v1981 = vunpack.c.l.b16 %v1917
        %v1982 = vunpack.c.l.b16 %v1918
        %v1983 = vunpack.c.l.b16 %v1919
        %v1984 = vunpack.c.l.b16 %v1920
        %v1985 = vunpack.c.l.b16 %v1921
        %v1986 = vunpack.c.l.b16 %v1922
        %v1987 = vpack.c.b16 %v1956, %v1955
        %v1988 = vpack.c.b16 %v1958, %v1957
        %v1989 = vpack.c.b16 %v1960, %v1959
        %v1990 = vpack.c.b16 %v1962, %v1961
        %v1991 = vpack.c.b16 %v1964, %v1963
        %v1992 = vpack.c.b16 %v1966, %v1965
        %v1993 = vpack.c.b16 %v1968, %v1967
        %v1994 = vpack.c.b16 %v1970, %v1969
        %v1995 = vpack.c.b16 %v1972, %v1971
        %v1996 = vpack.c.b16 %v1974, %v1973
        %v1997 = vpack.c.b16 %v1976, %v1975
        %v1998 = vpack.c.b16 %v1978, %v1977
        %v1999 = vpack.c.b16 %v1980, %v1979
        %v2000 = vpack.c.b16 %v1982, %v1981
        %v2001 = vpack.c.b16 %v1984, %v1983
        %v2002 = vpack.c.b16 %v1986, %v1985
        %2019 = vmatpush.bf16.msra.mxu0 %v1994
        %2020 = vmatpush.bf16.msra.mxu0 %v1993
        %2021 = vmatpush.bf16.msra.mxu0 %v1992
        %2022 = vmatpush.bf16.msra.mxu0 %v1991
        %2023 = vmatpush.bf16.msra.mxu0 %v1990
        %2024 = vmatpush.bf16.msra.mxu0 %v1989
        %2025 = vmatpush.bf16.msra.mxu0 %v1988
        %2026 = vmatpush.bf16.msra.mxu0 %v1987
        %2027 = vmatmul.bf16.gmra.mxu0 %v1889
        %v2028 = vpop.f32.mrf.mxu0
        %v2029 = vadd.f32 0.0, %v2028
        %v2030 = vpop.f32.mrf.mxu0
        %v2031 = vadd.f32 0.0, %v2030
        %2032 = vdwg.mxu0
        %2033 = vmatpush.bf16.msra.mxu0 %v2002
        %2034 = vmatpush.bf16.msra.mxu0 %v2001
        %2035 = vmatpush.bf16.msra.mxu0 %v2000
        %2036 = vmatpush.bf16.msra.mxu0 %v1999
        %2037 = vmatpush.bf16.msra.mxu0 %v1998
        %2038 = vmatpush.bf16.msra.mxu0 %v1997
        %2039 = vmatpush.bf16.msra.mxu0 %v1996
        %2040 = vmatpush.bf16.msra.mxu0 %v1995
        %2041 = vmatmul.bf16.gmra.mxu0 %v1890
        %v2042 = vpop.f32.mrf.mxu0
        %v2043 = vadd.f32 %v2029, %v2042
        %v2044 = vpop.f32.mrf.mxu0
        %v2045 = vadd.f32 %v2031, %v2044
        %2046 = vdwg.mxu0
        %v2047 = vadd.f32 %v877, %v2043
        %v2048 = vadd.f32 %v878, %v2045
        %v2049 = vld [vmem:[%s867] sm:$0x1]
        %v2051 = vperm.slane %v2049, 0
        %v2053 = vadd.f32 %v2047, %v2051
        %v2054 = vadd.f32 %v2048, %v2051
        %2055 = vst [vmem:[#allocation2] sm:$0xff] %v2053
        %2056 = vst [vmem:[#allocation2 + $0x8] sm:$0xff] %v2054
        %p2057 = scmp.eq.s32.totalorder %s42, 2
        // Predicated region
        $region105: #{model_forward.1} parent=87 // pred_check
          %p2058 = pneg %p2057
        $region106: #{model_forward.1} parent=87 // pred_check_branch
          %2060 = sbr.rel (%p2058) target = $region108
        $region107: #{model_forward.1} parent=87 // pred_region
          %v2061 = vadd.f32 %v2053, %v2054
          %v2062 = vrot.slane %v2061, 4
          %v2063 = vadd.f32 %v2061, %v2062
          %v2064 = vrot.slane %v2063, 2
          %v2065 = vadd.f32 %v2063, %v2064
          %v2066 = vrot.slane %v2065, 1
          %v2067 = vadd.f32 %v2065, %v2066
          %v2068 = vrcp.pop 16.0
          %v2069 = vmul.f32 16.0, %v2068
          %v2070 = vsub.f32 1.0, %v2069
          %v2071 = vmul.f32 %v2068, %v2070
          %v2072 = vadd.f32 %v2068, %v2071
          %vm2073 = vweird.f32 %v2068
          %v2074 = vsel %vm2073, %v2068, %v2072
          %v2075 = vmul.f32 %v2067, %v2074
          %v2076 = vpack.c.bf16 %v2075, %v2075
          %v2077 = vld [vmem:[%s15] sm:$0xf]
          %v2078 = vld [vmem:[%s15 + $0x4] sm:$0xf]
          %v2079 = vld [vmem:[%s15 + $0x8] sm:$0xf]
          %v2080 = vld [vmem:[%s15 + $0xc] sm:$0xf]
          %v2081 = vld [vmem:[%s15 + $0x10] sm:$0xf]
          %v2082 = vld [vmem:[%s15 + $0x14] sm:$0xf]
          %v2083 = vld [vmem:[%s15 + $0x18] sm:$0xf]
          %v2084 = vld [vmem:[%s15 + $0x1c] sm:$0xf]
          %v2085 = vld [vmem:[%s15 + $0x20] sm:$0xf]
          %v2086 = vld [vmem:[%s15 + $0x24] sm:$0xf]
          %v2087 = vld [vmem:[%s15 + $0x28] sm:$0xf]
          %v2088 = vld [vmem:[%s15 + $0x2c] sm:$0xf]
          %v2089 = vld [vmem:[%s15 + $0x30] sm:$0xf]
          %v2090 = vld [vmem:[%s15 + $0x34] sm:$0xf]
          %v2091 = vld [vmem:[%s15 + $0x38] sm:$0xf]
          %v2092 = vld [vmem:[%s15 + $0x3c] sm:$0xf]
          %v2093 = vld [vmem:[%s16] sm:$0x1]
          %v2110 = vunpack.c.l.b16 %v2077
          %v2111 = vunpack.c.l.b16 %v2078
          %v2112 = vunpack.c.l.b16 %v2079
          %v2113 = vunpack.c.l.b16 %v2080
          %v2114 = vunpack.c.l.b16 %v2081
          %v2115 = vunpack.c.l.b16 %v2082
          %v2116 = vunpack.c.l.b16 %v2083
          %v2117 = vunpack.c.l.b16 %v2084
          %v2118 = vunpack.c.l.b16 %v2085
          %v2119 = vunpack.c.l.b16 %v2086
          %v2120 = vunpack.c.l.b16 %v2087
          %v2121 = vunpack.c.l.b16 %v2088
          %v2122 = vunpack.c.l.b16 %v2089
          %v2123 = vunpack.c.l.b16 %v2090
          %v2124 = vunpack.c.l.b16 %v2091
          %v2125 = vunpack.c.l.b16 %v2092
          %v2126 = vpack.c.b16 %v2111, %v2110
          %v2127 = vpack.c.b16 %v2113, %v2112
          %v2128 = vpack.c.b16 %v2115, %v2114
          %v2129 = vpack.c.b16 %v2117, %v2116
          %v2130 = vpack.c.b16 %v2119, %v2118
          %v2131 = vpack.c.b16 %v2121, %v2120
          %v2132 = vpack.c.b16 %v2123, %v2122
          %v2133 = vpack.c.b16 %v2125, %v2124
          %2142 = vmatpush.bf16.msra.mxu0 %v2133
          %2143 = vmatpush.bf16.msra.mxu0 %v2132
          %2144 = vmatpush.bf16.msra.mxu0 %v2131
          %2145 = vmatpush.bf16.msra.mxu0 %v2130
          %2146 = vmatpush.bf16.msra.mxu0 %v2129
          %2147 = vmatpush.bf16.msra.mxu0 %v2128
          %2148 = vmatpush.bf16.msra.mxu0 %v2127
          %2149 = vmatpush.bf16.msra.mxu0 %v2126
          %2150 = vmatmul.bf16.gmra.mxu0 %v2076
          %v2151 = vpop.f32.mrf.mxu0
          %v2152 = vadd.f32 %v2093, %v2151
          %v2153 = vpop.f32.mrf.mxu0
          %2154 = vdwg.mxu0
          %2155 = vst [vmem:[%s818] sm:$0x1] %v2152
        $region108: #{model_forward.1} parent=87 // pred_fallthru
          _
        %s2156 = sand.u32 %s489, 1
        %s2157 = scalar_lea.sflag [#allocation5], %s2156
        %s2158 = sand.u32 %s489, 1
        %s2159 = scalar_lea.vmem [#allocation9], %s2158
        // Predicated region
        $region109: #{model_forward.1} parent=87 // pred_check
          %p2160 = pneg %p499
        $region110: #{model_forward.1} parent=87 // pred_check_branch
          %2162 = sbr.rel (%p2160) target = $region112
        $region111: #{model_forward.1} parent=87 // pred_region
          %2164 = vsyncadd %s2157, 0
          %s2165 = scalar_lea.hbm %s17, %s41
          %s2167 = sshll.u32 %s2159, 4
          %s2168 = int_to_ptr.vmem [resolvable:$true] %s2167
          %s2169 = sshll.u32 %s2165, 4
          %s2170 = int_to_ptr.hbm [resolvable:$true] %s2169
          %2172 = dma.vmem_to_hbm [thread:$0]  %s2168, 16, %s2170, %s2157
        $region112: #{model_forward.1} parent=87 // pred_fallthru
          _
      $region88: #{model_forward.1} parent=5 // pred_fallthru
        _
      %p2173 = scmp.le.s32.totalorder 2, %s32
      // Predicated region
      $region113: #{model_forward.1} parent=5 // pred_check
        %p2174 = pneg %p2173
      $region114: #{model_forward.1} parent=5 // pred_check_branch
        %2176 = sbr.rel (%p2174) target = $region116
      $region115: #{model_forward.1} parent=5 // pred_region
        %s2177 = ssub.s32 %s32, 2
        // Predicated region
        $region117: #{model_forward.1} parent=115 // pred_check
          %p2178 = pneg %p505
        $region118: #{model_forward.1} parent=115 // pred_check_branch
          %2180 = sbr.rel (%p2178) target = $region120
        $region119: #{model_forward.1} parent=115 // pred_region
          %s2181 = sand.u32 %s490, 1
          %s2182 = scalar_lea.sflag [#allocation5], %s2181
          %s2183 = sand.u32 %s490, 1
          %s2184 = scalar_lea.vmem [#allocation9], %s2183
          %2186 = dma.done %s2182, 16
        $region120: #{model_forward.1} parent=115 // pred_fallthru
          _
      $region116: #{model_forward.1} parent=5 // pred_fallthru
        _
    $region6: #{model_forward.1} parent=1 // loop_footer
      %s36 = sadd.s32 1, %s32
    $region7: #{model_forward.1} parent=1 // loop_footer_branch
      %31 = sbr.rel target = $region3
    $region8: #{model_forward.1} parent=1 // loop_exit
      _
    %2187 = vsyncpa [#allocation4], 1
    %s2188 = scalar_lea.sflag [#allocation4], 1
    %2189 = vsyncpa %s2188, 1
    %2190 = vsyncpa [#allocation7], 1
    %s2191 = scalar_lea.sflag [#allocation7], 1
    %2192 = vsyncpa %s2191, 1
    %2193 = vsyncpa [#allocation5], 1
    %s2194 = scalar_lea.sflag [#allocation5], 1
    %2195 = vsyncpa %s2194, 1

</llo_original>
